<compile_context>
chip_gen: v7x
topology: tpu7x:2x2x1
jax: 0.10.0
libtpu: 0.0.40
codegen_flags: <defaults>
</compile_context>

<pallas_src>
import math
import numpy as np
import jax
import jax.numpy as jnp
from jax.experimental import pallas as pl
from jax.experimental.pallas import tpu as pltpu

LANE = 128          # TPU lane width; channel + contraction axes padded to this
MAX_TILE_M = 1024   # row tile over the flattened B*H*W axis


# --------------------------------------------------------------------------
# Pallas kernel: fused (all conv paths as one matmul) + BN shift + Mish (1 exp)
# --------------------------------------------------------------------------
def _conv_bn_mish_kernel(col_ref, w_ref, bias_ref, o_ref):
    # bf16 operands, f32 accumulation on the MXU; BN scale pre-folded into w.
    y = jnp.dot(col_ref[...], w_ref[...], preferred_element_type=jnp.float32)
    y = y + bias_ref[...]
    # Mish(y) = y * tanh(softplus(y));  tanh(softplus(y)) == t/(t+2), t = e^y(e^y+2).
    e = jnp.exp(jnp.minimum(y, 20.0))     # clamp: unselected branch never overflows
    t = e * (e + 2.0)
    mish = y * t * pl.reciprocal(t + 2.0, approx=True)
    o_ref[...] = jnp.where(y > 20.0, y, mish).astype(o_ref.dtype)


def fused_conv_bn_mish(col, w_mat, bias):
    """col: (M, K_pad) bf16 im2col rows.  w_mat: (K_pad, N_pad) bf16 (BN scale folded).
    bias: (1, N_pad) f32.  Returns (M, N_pad) bf16."""
    m, k = col.shape
    _, n_pad = w_mat.shape
    tile_m = m if m <= MAX_TILE_M else MAX_TILE_M
    grid_m = pl.cdiv(m, tile_m)

    cost = pl.CostEstimate(
        flops=int(2 * m * k * n_pad),
        transcendentals=int(2 * m * n_pad),          # exp + approx reciprocal
        bytes_accessed=int(col.size * 2 + w_mat.size * 2 + bias.size * 4
                           + m * n_pad * 2),
    )

    return pl.pallas_call(
        _conv_bn_mish_kernel,
        out_shape=jax.ShapeDtypeStruct((m, n_pad), jnp.bfloat16),
        grid=(grid_m,),
        in_specs=[
            pl.BlockSpec((tile_m, k), lambda i: (i, 0)),   # activations, tiled rows
            pl.BlockSpec((k, n_pad), lambda i: (0, 0)),    # fused weights, resident
            pl.BlockSpec((1, n_pad), lambda i: (0, 0)),    # BN shift (bias)
        ],
        out_specs=pl.BlockSpec((tile_m, n_pad), lambda i: (i, 0)),
        compiler_params=pltpu.CompilerParams(
            dimension_semantics=("parallel",),             # no accumulator across rows
            allow_input_fusion=[True, False, False],       # fuse im2col into operand DMA
        ),
        cost_estimate=cost,
    )(col, w_mat, bias)


# --------------------------------------------------------------------------
# Glue: im2col for the *largest* kernel (covers every path's receptive field);
# K is zero-padded to a lane-dense multiple of 128.
# --------------------------------------------------------------------------
def _im2col(x_nhwc, kmax, k_pad):
    b, h, w, c = x_nhwc.shape
    pad = kmax // 2
    xp = jnp.pad(x_nhwc, ((0, 0), (pad, pad), (pad, pad), (0, 0)))
    cols = [xp[:, di:di + h, dj:dj + w, :]
            for di in range(kmax) for dj in range(kmax)]     # tap order (di, dj)
    k_taps = kmax * kmax * c
    if k_pad > k_taps:
        cols.append(jnp.zeros((b, h, w, k_pad - k_taps), x_nhwc.dtype))
    return jnp.concatenate(cols, axis=-1).reshape(b * h * w, k_pad)


# --------------------------------------------------------------------------
# Fractional max-pool (PyTorch semantics: kernel_size=2, pseudo-random intervals),
# operating on the lane-dense NHWC layout.
# --------------------------------------------------------------------------
def _frac_pool_starts(u, in_size, out_size, pool_size=2):
    """PyTorch generate_intervals(): u in [0,1), shape (B, C)."""
    last = jnp.full(u.shape + (1,), in_size - pool_size, jnp.int32)
    if out_size <= 1:
        return last
    alpha = (in_size - pool_size) / (out_size - 1)
    i = jnp.arange(out_size - 1, dtype=jnp.float32)
    seq = (jnp.floor((i + u[..., None]) * alpha)
           - jnp.floor(u[..., None] * alpha)).astype(jnp.int32)
    return jnp.concatenate([seq, last], axis=-1)


def fractional_max_pool2d_nhwc(x_nhwc, out_h, out_w, samples):
    # TODO(synk): per-(batch,channel) data-dependent 2x2 gather has no clean Pallas
    #             fit; kept in plain JAX/XLA.  Random samples come from jax.random
    #             (deterministic) instead of torch's global RNG.
    b, h, w, c = x_nhwc.shape
    hs = _frac_pool_starts(samples[..., 0], h, out_h)             # (B, C, out_h)
    ws = _frac_pool_starts(samples[..., 1], w, out_w)             # (B, C, out_w)
    two = jnp.arange(2, dtype=jnp.int32)
    hi = (hs[..., None] + two).reshape(b, c, out_h * 2)           # (B, C, 2*out_h)
    wi = (ws[..., None] + two).reshape(b, c, out_w * 2)           # (B, C, 2*out_w)
    hi_full = jnp.broadcast_to(jnp.transpose(hi, (0, 2, 1))[:, :, None, :],
                               (b, out_h * 2, w, c))
    g = jnp.take_along_axis(x_nhwc, hi_full, axis=1)              # (B, 2*out_h, W, C)
    wi_full = jnp.broadcast_to(jnp.transpose(wi, (0, 2, 1))[:, None, :, :],
                               (b, out_h * 2, out_w * 2, c))
    g = jnp.take_along_axis(g, wi_full, axis=2)                   # (B, 2oh, 2ow, C)
    g = g.reshape(b, out_h, 2, out_w, 2, c)
    return g.max(axis=(2, 4))                                     # (B, out_h, out_w, C)


# --------------------------------------------------------------------------
# Parameter construction (mirrors EncoderLayer1st.__init__); BN scale folded
# into the weight columns, K and N padded to lane multiples.
# --------------------------------------------------------------------------
def build_encoder_layer1st_params(key, output_channels, kernel_list):
    kernel_list = sorted(kernel_list)
    assert all(k % 2 == 1 for k in kernel_list), "odd kernel sizes expected"
    in_ch = 3
    kmax = max(kernel_list)
    eps = 1e-5

    out_chs = []
    for k in kernel_list:
        if k == 1:
            oc = round(output_channels / 4)
        elif k == 3:
            oc = round(output_channels * 3 / 4)
        else:
            oc = round((3.0 / k) ** 2 * output_channels)
        out_chs.append(oc)
    n_total = sum(out_chs)
    n_pad = ((n_total + LANE - 1) // LANE) * LANE
    k_taps = kmax * kmax * in_ch
    k_pad = ((k_taps + LANE - 1) // LANE) * LANE

    # One fused weight matrix covering every path; smaller kernels sit in the
    # centre taps of the kmax x kmax receptive field, everything else is zero.
    w_embed = np.zeros((kmax, kmax, in_ch, n_pad), np.float32)
    bn_shift = np.zeros((1, n_pad), np.float32)

    col_off = 0
    for k, oc in zip(kernel_list, out_chs):
        key, kk = jax.random.split(key)
        fan_in = in_ch * k * k
        bound = 1.0 / math.sqrt(float(fan_in))       # PyTorch Conv2d default init
        w = np.asarray(jax.random.uniform(kk, (oc, in_ch, k, k),
                                          jnp.float32, -bound, bound))
        # BatchNorm2d(oc) eval-mode, PyTorch defaults: gamma=1, beta=0,
        # running_mean=0, running_var=1 -> scale folded into weights, shift as bias.
        gamma = np.ones((oc,), np.float32)
        beta = np.zeros((oc,), np.float32)
        r_mean = np.zeros((oc,), np.float32)
        r_var = np.ones((oc,), np.float32)
        s = gamma / np.sqrt(r_var + eps)

        off = (kmax - k) // 2
        # (oc, in, kh, kw) -> (kh, kw, in, oc), scale folded, placed at centre taps.
        w_embed[off:off + k, off:off + k, :, col_off:col_off + oc] = \
            np.transpose(w, (2, 3, 1, 0)) * s[None, None, None, :]
        bn_shift[0, col_off:col_off + oc] = beta - r_mean * s
        col_off += oc

    w_mat = np.zeros((k_pad, n_pad), np.float32)
    w_mat[:k_taps] = w_embed.reshape(k_taps, n_pad)

    return {
        'kmax': kmax,
        'k_pad': k_pad,
        'n_total': n_total,
        'n_pad': n_pad,
        'w_mat': jnp.asarray(w_mat, jnp.bfloat16),
        'bn_shift': jnp.asarray(bn_shift),
    }


# --------------------------------------------------------------------------
# EncoderLayer1st forward
# --------------------------------------------------------------------------
def encoder_layer1st_forward(params, x_nchw, out_hw, samples,
                             down_sample_ratio=-1.0):
    # NCHW (PyTorch convention) -> NHWC; channels last -> lane axis.
    x = jnp.transpose(x_nchw, (0, 2, 3, 1))
    b, h, w, _ = x.shape

    # All conv paths + folded BatchNorm + Mish in a single fused Pallas matmul.
    col = _im2col(x.astype(jnp.bfloat16), params['kmax'], params['k_pad'])
    act = fused_conv_bn_mish(col, params['w_mat'], params['bn_shift'])
    n_pad = params['n_pad']
    act = act.reshape(b, h, w, n_pad)              # keep lane-dense padded channels

    if 0.0 < down_sample_ratio < 1.0:
        out_h, out_w = int(h * down_sample_ratio), int(w * down_sample_ratio)
    else:
        out_h, out_w = out_hw

    # Pool on the padded NHWC layout; pad the per-(batch,channel) samples for the
    # dummy lane-padding channels (their activations are a constant mish(0)=0).
    n_total = params['n_total']
    samples_p = jnp.pad(samples, ((0, 0), (0, n_pad - n_total), (0, 0)),
                        constant_values=0.25)
    pooled = fractional_max_pool2d_nhwc(act, out_h, out_w, samples_p)

    # Single cheap layout pass on the tiny pooled tensor: drop lane padding,
    # back to NCHW, f32 like the PyTorch module.
    return jnp.transpose(pooled[..., :n_total], (0, 3, 1, 2)).astype(jnp.float32)


# --------------------------------------------------------------------------
if __name__ == "__main__":
    key = jax.random.PRNGKey(0)

    # EncoderLayer1st(output_channels=32, kernel_list=[3, 1, 5])
    #   -> per-path out channels 8 (k=1), 24 (k=3), 12 (k=5) -> 44 total.
    B, H, W = 2, 16, 16
    OUTPUT_CHANNELS = 32
    KERNEL_LIST = [3, 1, 5]
    OUT_H, OUT_W = 8, 8            # layer.set_size(8, 8)

    key, k_x, k_s, k_p = jax.random.split(key, 4)
    x = jax.random.normal(k_x, (B, 3, H, W), dtype=jnp.float32)
    params = build_encoder_layer1st_params(k_p, OUTPUT_CHANNELS, KERNEL_LIST)
    samples = jax.random.uniform(k_s, (B, params['n_total'], 2), jnp.float32)

    fwd = jax.jit(lambda xx, ss: encoder_layer1st_forward(
        params, xx, (OUT_H, OUT_W), ss))
    out = jax.block_until_ready(fwd(x, samples))

    assert out.shape == (B, params['n_total'], OUT_H, OUT_W), out.shape
    assert bool(jnp.all(jnp.isfinite(out)))
    print("KERNEL_OK")
</pallas_src>

<mosaic_0001>
module attributes {stable_mosaic.version = 11 : i64} {
  func.func private @main(%arg0: i32) attributes {dimension_semantics = [#tpu.dimension_semantics<core_parallel>], iteration_bounds = array<i64: 2>, tpu.core_type = #tpu.core_type<sc_scalar_subcore>, window_params = []} {
    return
  }
}

module attributes {stable_mosaic.version = 11 : i64} {
  func.func private @main(%arg0: i32) attributes {dimension_semantics = [#tpu.dimension_semantics<core_parallel>], iteration_bounds = array<i64: 2>, tpu.core_type = #tpu.core_type<sc_scalar_subcore>, window_params = []} {
    return
  }
}

module attributes {stable_mosaic.version = 11 : i64} {
  func.func @_conv_bn_mish_kernel(%arg0: i32, %arg1: memref<512x128xbf16, #tpu.memory_space<vmem>>, %arg2: memref<128x128xbf16, #tpu.memory_space<vmem>>, %arg3: memref<1x128xf32, #tpu.memory_space<vmem>>, %arg4: memref<512x128xbf16, #tpu.memory_space<vmem>>) attributes {dimension_semantics = [#tpu.dimension_semantics<parallel>], iteration_bounds = array<i64: 1>, scalar_prefetch = 0 : i64, scratch_operands = 0 : i64, tpu.core_type = #tpu.core_type<tc>, window_params = [{transform_indices = @transform_0, window_bounds = array<i64: 512, 128>}, {pipeline_mode = #tpu.pipeline_mode<synchronous>, transform_indices = @transform_1, window_bounds = array<i64: 128, 128>}, {pipeline_mode = #tpu.pipeline_mode<synchronous>, transform_indices = @transform_2, window_bounds = array<i64: 1, 128>}, {transform_indices = @transform_3, window_bounds = array<i64: 512, 128>}]} {
    %c0 = arith.constant 0 : index
    %c0_0 = arith.constant 0 : index
    %0 = vector.load %arg1[%c0, %c0_0] : memref<512x128xbf16, #tpu.memory_space<vmem>>, vector<512x128xbf16>
    %c0_1 = arith.constant 0 : index
    %c0_2 = arith.constant 0 : index
    %1 = vector.load %arg2[%c0_1, %c0_2] : memref<128x128xbf16, #tpu.memory_space<vmem>>, vector<128x128xbf16>
    %cst = arith.constant dense<0.000000e+00> : vector<512x128xf32>
    %2 = tpu.matmul %0, %1, %cst {dimension_numbers = #tpu.dot_dimension_numbers<[1], [0], [0], [1], [0, 0, 1, 1], [], []>} : vector<512x128xbf16>, vector<128x128xbf16>, vector<512x128xf32> -> vector<512x128xf32>
    %c0_3 = arith.constant 0 : index
    %c0_4 = arith.constant 0 : index
    %3 = vector.load %arg3[%c0_3, %c0_4] : memref<1x128xf32, #tpu.memory_space<vmem>>, vector<1x128xf32>
    %4 = vector.broadcast %3 : vector<1x128xf32> to vector<512x128xf32>
    %5 = arith.addf %2, %4 : vector<512x128xf32>
    %cst_5 = arith.constant 2.000000e+01 : f32
    %6 = vector.broadcast %cst_5 : f32 to vector<512x128xf32>
    %7 = arith.minimumf %5, %6 : vector<512x128xf32>
    %8 = math.exp %7 : vector<512x128xf32>
    %cst_6 = arith.constant 2.000000e+00 : f32
    %9 = vector.broadcast %cst_6 : f32 to vector<512x128xf32>
    %10 = arith.addf %8, %9 : vector<512x128xf32>
    %11 = arith.mulf %8, %10 : vector<512x128xf32>
    %12 = arith.mulf %5, %11 : vector<512x128xf32>
    %cst_7 = arith.constant 2.000000e+00 : f32
    %13 = vector.broadcast %cst_7 : f32 to vector<512x128xf32>
    %14 = arith.addf %11, %13 : vector<512x128xf32>
    %15 = tpu.reciprocal %14 {approx = true} : vector<512x128xf32> -> vector<512x128xf32>
    %16 = arith.mulf %12, %15 : vector<512x128xf32>
    %cst_8 = arith.constant 2.000000e+01 : f32
    %17 = vector.broadcast %cst_8 : f32 to vector<512x128xf32>
    %18 = arith.cmpf ogt, %5, %17 : vector<512x128xf32>
    %19 = arith.select %18, %5, %16 : vector<512x128xi1>, vector<512x128xf32>
    %20 = arith.truncf %19 : vector<512x128xf32> to vector<512x128xbf16>
    %c0_9 = arith.constant 0 : index
    %c0_10 = arith.constant 0 : index
    %21 = vector.load %arg4[%c0_9, %c0_10] : memref<512x128xbf16, #tpu.memory_space<vmem>>, vector<512x128xbf16>
    tpu.vector_store %arg4[%c0_9, %c0_10], %20 {strides = array<i32>} : memref<512x128xbf16, #tpu.memory_space<vmem>>, vector<512x128xbf16>,
    return
  }
  func.func @transform_0(%arg0: i32) -> (i32, i32) {
    %c0_i32 = arith.constant 0 : i32
    %c0_i32_0 = arith.constant 0 : i32
    return %arg0, %c0_i32 : i32, i32
  }
  func.func @transform_1(%arg0: i32) -> (i32, i32) {
    %c0_i32 = arith.constant 0 : i32
    %c0_i32_0 = arith.constant 0 : i32
    %c0_i32_1 = arith.constant 0 : i32
    return %c0_i32, %c0_i32_0 : i32, i32
  }
  func.func @transform_2(%arg0: i32) -> (i32, i32) {
    %c0_i32 = arith.constant 0 : i32
    %c0_i32_0 = arith.constant 0 : i32
    %c0_i32_1 = arith.constant 0 : i32
    return %c0_i32, %c0_i32_0 : i32, i32
  }
  func.func @transform_3(%arg0: i32) -> (i32, i32) {
    %c0_i32 = arith.constant 0 : i32
    %c0_i32_0 = arith.constant 0 : i32
    return %arg0, %c0_i32 : i32, i32
  }
}

</mosaic_0001>

<llo_original>
// kernel: _lambda_.1
$region0: #{_lambda_.1}
  #allocation0 [shape = 'u32[]', space=smem, size = 0x4, offset = 0x4, fixed_abs, tag = 'smem constant byte address 0x4 - core index']
  #allocation1 [shape = 'u32[144,128]{1,0:T(1,128)}', space=vmem, size = 0x12000, scoped, tag = 'internal scratch']
  %s0 = inlined_call_operand.vmem [shape: bf16[512,128], index: 0, kind: input, shape index: {}]
  %s1 = inlined_call_operand.vmem [shape: bf16[128,128], index: 1, kind: input, shape index: {}]
  %s2 = inlined_call_operand.vmem [shape: f32[1,128], index: 2, kind: input, shape index: {}]
  %s3 = inlined_call_operand.hbm [shape: bf16[512,128], index: 3, kind: output, shape index: {}]
  %s4 = sld [smem:[#allocation0]]
  $region22: #{_lambda_.1} parent=0
    _
  %s6 = ssub.s32 1, %s4
  %s7 = scalar_select 0, %s6, %s4
  $region1: #{_lambda_.1} parent=0
    #allocation2 [shape = 'u8[131072]{0}', space=vmem, size = 0x20000, scoped, tag = 'output window, operand 0, single buffered']
    #allocation3 [shape = 's32[1]{0}', space=sflag, size = 0x4, scoped, tag = 'scoped memory for _lambda_.1']
    %8 = vsyncpa [#allocation3], 0
    // Predicated region
    $region2: #{_lambda_.1} parent=1 // pred_check
      _
    $region3: #{_lambda_.1} parent=1 // pred_check_branch
      %10 = sbr.rel (0) target = $region5
    $region4: #{_lambda_.1} parent=1 // pred_region
      _
    $region5: #{_lambda_.1} parent=1 // pred_fallthru
      _
    // Predicated region
    $region6: #{_lambda_.1} parent=1 // pred_check
      _
    $region7: #{_lambda_.1} parent=1 // pred_check_branch
      %12 = sbr.rel (0) target = $region9
    $region8: #{_lambda_.1} parent=1 // pred_region
      _
    $region9: #{_lambda_.1} parent=1 // pred_fallthru
      _
    // Predicated region
    $region10: #{_lambda_.1} parent=1 // pred_check
      _
    $region11: #{_lambda_.1} parent=1 // pred_check_branch
      %14 = sbr.rel (0) target = $region13
    $region12: #{_lambda_.1} parent=1 // pred_region
      _
    $region13: #{_lambda_.1} parent=1 // pred_fallthru
      _
    %v16 = vld [vmem:[%s0] sm:$0xf]
    %v17 = vld [vmem:[%s0 + $0x4] sm:$0xf]
    %v18 = vld [vmem:[%s0 + $0x8] sm:$0xf]
    %v19 = vld [vmem:[%s0 + $0xc] sm:$0xf]
    %v20 = vld [vmem:[%s0 + $0x10] sm:$0xf]
    %v21 = vld [vmem:[%s0 + $0x14] sm:$0xf]
    %v22 = vld [vmem:[%s0 + $0x18] sm:$0xf]
    %v23 = vld [vmem:[%s0 + $0x1c] sm:$0xf]
    %v24 = vld [vmem:[%s0 + $0x20] sm:$0xf]
    %v25 = vld [vmem:[%s0 + $0x24] sm:$0xf]
    %v26 = vld [vmem:[%s0 + $0x28] sm:$0xf]
    %v27 = vld [vmem:[%s0 + $0x2c] sm:$0xf]
    %v28 = vld [vmem:[%s0 + $0x30] sm:$0xf]
    %v29 = vld [vmem:[%s0 + $0x34] sm:$0xf]
    %v30 = vld [vmem:[%s0 + $0x38] sm:$0xf]
    %v31 = vld [vmem:[%s0 + $0x3c] sm:$0xf]
    %v32 = vld [vmem:[%s0 + $0x40] sm:$0xf]
    %v33 = vld [vmem:[%s0 + $0x44] sm:$0xf]
    %v34 = vld [vmem:[%s0 + $0x48] sm:$0xf]
    %v35 = vld [vmem:[%s0 + $0x4c] sm:$0xf]
    %v36 = vld [vmem:[%s0 + $0x50] sm:$0xf]
    %v37 = vld [vmem:[%s0 + $0x54] sm:$0xf]
    %v38 = vld [vmem:[%s0 + $0x58] sm:$0xf]
    %v39 = vld [vmem:[%s0 + $0x5c] sm:$0xf]
    %v40 = vld [vmem:[%s0 + $0x60] sm:$0xf]
    %v41 = vld [vmem:[%s0 + $0x64] sm:$0xf]
    %v42 = vld [vmem:[%s0 + $0x68] sm:$0xf]
    %v43 = vld [vmem:[%s0 + $0x6c] sm:$0xf]
    %v44 = vld [vmem:[%s0 + $0x70] sm:$0xf]
    %v45 = vld [vmem:[%s0 + $0x74] sm:$0xf]
    %v46 = vld [vmem:[%s0 + $0x78] sm:$0xf]
    %v47 = vld [vmem:[%s0 + $0x7c] sm:$0xf]
    %v48 = vld [vmem:[%s0 + $0x80] sm:$0xf]
    %v49 = vld [vmem:[%s0 + $0x84] sm:$0xf]
    %v50 = vld [vmem:[%s0 + $0x88] sm:$0xf]
    %v51 = vld [vmem:[%s0 + $0x8c] sm:$0xf]
    %v52 = vld [vmem:[%s0 + $0x90] sm:$0xf]
    %v53 = vld [vmem:[%s0 + $0x94] sm:$0xf]
    %v54 = vld [vmem:[%s0 + $0x98] sm:$0xf]
    %v55 = vld [vmem:[%s0 + $0x9c] sm:$0xf]
    %v56 = vld [vmem:[%s0 + $0xa0] sm:$0xf]
    %v57 = vld [vmem:[%s0 + $0xa4] sm:$0xf]
    %v58 = vld [vmem:[%s0 + $0xa8] sm:$0xf]
    %v59 = vld [vmem:[%s0 + $0xac] sm:$0xf]
    %v60 = vld [vmem:[%s0 + $0xb0] sm:$0xf]
    %v61 = vld [vmem:[%s0 + $0xb4] sm:$0xf]
    %v62 = vld [vmem:[%s0 + $0xb8] sm:$0xf]
    %v63 = vld [vmem:[%s0 + $0xbc] sm:$0xf]
    %v64 = vld [vmem:[%s0 + $0xc0] sm:$0xf]
    %v65 = vld [vmem:[%s0 + $0xc4] sm:$0xf]
    %v66 = vld [vmem:[%s0 + $0xc8] sm:$0xf]
    %v67 = vld [vmem:[%s0 + $0xcc] sm:$0xf]
    %v68 = vld [vmem:[%s0 + $0xd0] sm:$0xf]
    %v69 = vld [vmem:[%s0 + $0xd4] sm:$0xf]
    %v70 = vld [vmem:[%s0 + $0xd8] sm:$0xf]
    %v71 = vld [vmem:[%s0 + $0xdc] sm:$0xf]
    %v72 = vld [vmem:[%s0 + $0xe0] sm:$0xf]
    %v73 = vld [vmem:[%s0 + $0xe4] sm:$0xf]
    %v74 = vld [vmem:[%s0 + $0xe8] sm:$0xf]
    %v75 = vld [vmem:[%s0 + $0xec] sm:$0xf]
    %v76 = vld [vmem:[%s0 + $0xf0] sm:$0xf]
    %v77 = vld [vmem:[%s0 + $0xf4] sm:$0xf]
    %v78 = vld [vmem:[%s0 + $0xf8] sm:$0xf]
    %v79 = vld [vmem:[%s0 + $0xfc] sm:$0xf]
    %v80 = vld [vmem:[%s1] sm:$0xf]
    %v81 = vld [vmem:[%s1 + $0x4] sm:$0xf]
    %v82 = vld [vmem:[%s1 + $0x8] sm:$0xf]
    %v83 = vld [vmem:[%s1 + $0xc] sm:$0xf]
    %v84 = vld [vmem:[%s1 + $0x10] sm:$0xf]
    %v85 = vld [vmem:[%s1 + $0x14] sm:$0xf]
    %v86 = vld [vmem:[%s1 + $0x18] sm:$0xf]
    %v87 = vld [vmem:[%s1 + $0x1c] sm:$0xf]
    %v88 = vld [vmem:[%s1 + $0x20] sm:$0xf]
    %v89 = vld [vmem:[%s1 + $0x24] sm:$0xf]
    %v90 = vld [vmem:[%s1 + $0x28] sm:$0xf]
    %v91 = vld [vmem:[%s1 + $0x2c] sm:$0xf]
    %v92 = vld [vmem:[%s1 + $0x30] sm:$0xf]
    %v93 = vld [vmem:[%s1 + $0x34] sm:$0xf]
    %v94 = vld [vmem:[%s1 + $0x38] sm:$0xf]
    %v95 = vld [vmem:[%s1 + $0x3c] sm:$0xf]
    %v96 = vld [vmem:[%s2] sm:$0x1]
    %v98 = vlaneseq
    %v99 = vshrl.u32 %v98, 7
    %v100 = vsub.s32 0, %v99
    %v101 = vrot.slane %v96, %v100
    %v167 = vunpack.c.l.b16 %v16
    %v168 = vunpack.c.l.b16 %v17
    %v169 = vunpack.c.l.b16 %v18
    %v170 = vunpack.c.l.b16 %v19
    %v171 = vunpack.c.l.b16 %v20
    %v172 = vunpack.c.l.b16 %v21
    %v173 = vunpack.c.l.b16 %v22
    %v174 = vunpack.c.l.b16 %v23
    %v175 = vunpack.c.l.b16 %v24
    %v176 = vunpack.c.l.b16 %v25
    %v177 = vunpack.c.l.b16 %v26
    %v178 = vunpack.c.l.b16 %v27
    %v179 = vunpack.c.l.b16 %v28
    %v180 = vunpack.c.l.b16 %v29
    %v181 = vunpack.c.l.b16 %v30
    %v182 = vunpack.c.l.b16 %v31
    %v183 = vunpack.c.l.b16 %v32
    %v184 = vunpack.c.l.b16 %v33
    %v185 = vunpack.c.l.b16 %v34
    %v186 = vunpack.c.l.b16 %v35
    %v187 = vunpack.c.l.b16 %v36
    %v188 = vunpack.c.l.b16 %v37
    %v189 = vunpack.c.l.b16 %v38
    %v190 = vunpack.c.l.b16 %v39
    %v191 = vunpack.c.l.b16 %v40
    %v192 = vunpack.c.l.b16 %v41
    %v193 = vunpack.c.l.b16 %v42
    %v194 = vunpack.c.l.b16 %v43
    %v195 = vunpack.c.l.b16 %v44
    %v196 = vunpack.c.l.b16 %v45
    %v197 = vunpack.c.l.b16 %v46
    %v198 = vunpack.c.l.b16 %v47
    %v199 = vunpack.c.l.b16 %v48
    %v200 = vunpack.c.l.b16 %v49
    %v201 = vunpack.c.l.b16 %v50
    %v202 = vunpack.c.l.b16 %v51
    %v203 = vunpack.c.l.b16 %v52
    %v204 = vunpack.c.l.b16 %v53
    %v205 = vunpack.c.l.b16 %v54
    %v206 = vunpack.c.l.b16 %v55
    %v207 = vunpack.c.l.b16 %v56
    %v208 = vunpack.c.l.b16 %v57
    %v209 = vunpack.c.l.b16 %v58
    %v210 = vunpack.c.l.b16 %v59
    %v211 = vunpack.c.l.b16 %v60
    %v212 = vunpack.c.l.b16 %v61
    %v213 = vunpack.c.l.b16 %v62
    %v214 = vunpack.c.l.b16 %v63
    %v215 = vunpack.c.l.b16 %v64
    %v216 = vunpack.c.l.b16 %v65
    %v217 = vunpack.c.l.b16 %v66
    %v218 = vunpack.c.l.b16 %v67
    %v219 = vunpack.c.l.b16 %v68
    %v220 = vunpack.c.l.b16 %v69
    %v221 = vunpack.c.l.b16 %v70
    %v222 = vunpack.c.l.b16 %v71
    %v223 = vunpack.c.l.b16 %v72
    %v224 = vunpack.c.l.b16 %v73
    %v225 = vunpack.c.l.b16 %v74
    %v226 = vunpack.c.l.b16 %v75
    %v227 = vunpack.c.l.b16 %v76
    %v228 = vunpack.c.l.b16 %v77
    %v229 = vunpack.c.l.b16 %v78
    %v230 = vunpack.c.l.b16 %v79
    %v231 = vpack.c.b16 %v168, %v167
    %v232 = vpack.c.b16 %v170, %v169
    %v233 = vpack.c.b16 %v172, %v171
    %v234 = vpack.c.b16 %v174, %v173
    %v235 = vpack.c.b16 %v176, %v175
    %v236 = vpack.c.b16 %v178, %v177
    %v237 = vpack.c.b16 %v180, %v179
    %v238 = vpack.c.b16 %v182, %v181
    %v239 = vpack.c.b16 %v184, %v183
    %v240 = vpack.c.b16 %v186, %v185
    %v241 = vpack.c.b16 %v188, %v187
    %v242 = vpack.c.b16 %v190, %v189
    %v243 = vpack.c.b16 %v192, %v191
    %v244 = vpack.c.b16 %v194, %v193
    %v245 = vpack.c.b16 %v196, %v195
    %v246 = vpack.c.b16 %v198, %v197
    %v247 = vpack.c.b16 %v200, %v199
    %v248 = vpack.c.b16 %v202, %v201
    %v249 = vpack.c.b16 %v204, %v203
    %v250 = vpack.c.b16 %v206, %v205
    %v251 = vpack.c.b16 %v208, %v207
    %v252 = vpack.c.b16 %v210, %v209
    %v253 = vpack.c.b16 %v212, %v211
    %v254 = vpack.c.b16 %v214, %v213
    %v255 = vpack.c.b16 %v216, %v215
    %v256 = vpack.c.b16 %v218, %v217
    %v257 = vpack.c.b16 %v220, %v219
    %v258 = vpack.c.b16 %v222, %v221
    %v259 = vpack.c.b16 %v224, %v223
    %v260 = vpack.c.b16 %v226, %v225
    %v261 = vpack.c.b16 %v228, %v227
    %v262 = vpack.c.b16 %v230, %v229
    %v311 = vunpack.c.l.b16 %v80
    %v312 = vunpack.c.l.b16 %v81
    %v313 = vunpack.c.l.b16 %v82
    %v314 = vunpack.c.l.b16 %v83
    %v315 = vunpack.c.l.b16 %v84
    %v316 = vunpack.c.l.b16 %v85
    %v317 = vunpack.c.l.b16 %v86
    %v318 = vunpack.c.l.b16 %v87
    %v319 = vunpack.c.l.b16 %v88
    %v320 = vunpack.c.l.b16 %v89
    %v321 = vunpack.c.l.b16 %v90
    %v322 = vunpack.c.l.b16 %v91
    %v323 = vunpack.c.l.b16 %v92
    %v324 = vunpack.c.l.b16 %v93
    %v325 = vunpack.c.l.b16 %v94
    %v326 = vunpack.c.l.b16 %v95
    %v327 = vpack.c.b16 %v312, %v311
    %v328 = vpack.c.b16 %v314, %v313
    %v329 = vpack.c.b16 %v316, %v315
    %v330 = vpack.c.b16 %v318, %v317
    %v331 = vpack.c.b16 %v320, %v319
    %v332 = vpack.c.b16 %v322, %v321
    %v333 = vpack.c.b16 %v324, %v323
    %v334 = vpack.c.b16 %v326, %v325
    %343 = vmatprep.subr.bf16.mxu0 0
    %344 = vmatpush1.bf16.msra.mxu0 %v327
    %345 = vmatprep.subr.bf16.mxu0 0
    %346 = vmatpush1.bf16.msra.mxu0 %v328
    %347 = vmatprep.subr.bf16.mxu0 0
    %348 = vmatpush1.bf16.msra.mxu0 %v329
    %349 = vmatprep.subr.bf16.mxu0 0
    %350 = vmatpush1.bf16.msra.mxu0 %v330
    %351 = vmatprep.subr.bf16.mxu0 0
    %352 = vmatpush1.bf16.msra.mxu0 %v331
    %353 = vmatprep.subr.bf16.mxu0 0
    %354 = vmatpush1.bf16.msra.mxu0 %v332
    %355 = vmatprep.subr.bf16.mxu0 0
    %356 = vmatpush1.bf16.msra.mxu0 %v333
    %357 = vmatprep.subr.bf16.mxu0 0
    %358 = vmatpush1.bf16.msra.mxu0 %v334
    %359 = vmatprep.subr.bf16.mxu0 0
    %360 = vmatpush1.bf16.msra.mxu0 0
    %361 = vmatprep.subr.bf16.mxu0 0
    %362 = vmatpush1.bf16.msra.mxu0 0
    %363 = vmatprep.subr.bf16.mxu0 0
    %364 = vmatpush1.bf16.msra.mxu0 0
    %365 = vmatprep.subr.bf16.mxu0 0
    %366 = vmatpush1.bf16.msra.mxu0 0
    %367 = vmatprep.subr.bf16.mxu0 0
    %368 = vmatpush1.bf16.msra.mxu0 0
    %369 = vmatprep.subr.bf16.mxu0 0
    %370 = vmatpush1.bf16.msra.mxu0 0
    %371 = vmatprep.subr.bf16.mxu0 0
    %372 = vmatpush1.bf16.msra.mxu0 0
    %373 = vmatprep.subr.bf16.mxu0 0
    %374 = vmatpush1.bf16.msra.mxu0 0
    %375 = vmatprep.mubr.bf16.mxu0 0
    %376 = vmatmul.mubr.bf16.gmra.mrb[0].mxu0 %v231
    %v377 = vpop.f32.mrb[0].mxu0
    %v378 = vadd.f32 %v101, %v377
    %v379 = vpop.f32.mrb[0].mxu0
    %v380 = vpop.f32.mrb[0].mxu0
    %v381 = vadd.f32 %v101, %v380
    %v382 = vpop.f32.mrb[0].mxu0
    %383 = vmatprep.mubr.bf16.mxu0 0
    %384 = vmatmul.mubr.bf16.gmra.mrb[0].mxu0 %v232
    %v385 = vpop.f32.mrb[0].mxu0
    %v386 = vadd.f32 %v101, %v385
    %v387 = vpop.f32.mrb[0].mxu0
    %v388 = vpop.f32.mrb[0].mxu0
    %v389 = vadd.f32 %v101, %v388
    %v390 = vpop.f32.mrb[0].mxu0
    %391 = vmatprep.mubr.bf16.mxu0 0
    %392 = vmatmul.mubr.bf16.gmra.mrb[0].mxu0 %v233
    %v393 = vpop.f32.mrb[0].mxu0
    %v394 = vadd.f32 %v101, %v393
    %v395 = vpop.f32.mrb[0].mxu0
    %v396 = vpop.f32.mrb[0].mxu0
    %v397 = vadd.f32 %v101, %v396
    %v398 = vpop.f32.mrb[0].mxu0
    %399 = vmatprep.mubr.bf16.mxu0 0
    %400 = vmatmul.mubr.bf16.gmra.mrb[0].mxu0 %v234
    %v401 = vpop.f32.mrb[0].mxu0
    %v402 = vadd.f32 %v101, %v401
    %v403 = vpop.f32.mrb[0].mxu0
    %v404 = vpop.f32.mrb[0].mxu0
    %v405 = vadd.f32 %v101, %v404
    %v406 = vpop.f32.mrb[0].mxu0
    %407 = vmatprep.mubr.bf16.mxu0 0
    %408 = vmatmul.mubr.bf16.gmra.mrb[0].mxu0 %v235
    %v409 = vpop.f32.mrb[0].mxu0
    %v410 = vadd.f32 %v101, %v409
    %v411 = vpop.f32.mrb[0].mxu0
    %v412 = vpop.f32.mrb[0].mxu0
    %v413 = vadd.f32 %v101, %v412
    %v414 = vpop.f32.mrb[0].mxu0
    %415 = vmatprep.mubr.bf16.mxu0 0
    %416 = vmatmul.mubr.bf16.gmra.mrb[0].mxu0 %v236
    %v417 = vpop.f32.mrb[0].mxu0
    %v418 = vadd.f32 %v101, %v417
    %v419 = vpop.f32.mrb[0].mxu0
    %v420 = vpop.f32.mrb[0].mxu0
    %v421 = vadd.f32 %v101, %v420
    %v422 = vpop.f32.mrb[0].mxu0
    %423 = vmatprep.mubr.bf16.mxu0 0
    %424 = vmatmul.mubr.bf16.gmra.mrb[0].mxu0 %v237
    %v425 = vpop.f32.mrb[0].mxu0
    %v426 = vadd.f32 %v101, %v425
    %v427 = vpop.f32.mrb[0].mxu0
    %v428 = vpop.f32.mrb[0].mxu0
    %v429 = vadd.f32 %v101, %v428
    %v430 = vpop.f32.mrb[0].mxu0
    %431 = vmatprep.mubr.bf16.mxu0 0
    %432 = vmatmul.mubr.bf16.gmra.mrb[0].mxu0 %v238
    %v433 = vpop.f32.mrb[0].mxu0
    %v434 = vadd.f32 %v101, %v433
    %v435 = vpop.f32.mrb[0].mxu0
    %v436 = vpop.f32.mrb[0].mxu0
    %v437 = vadd.f32 %v101, %v436
    %v438 = vpop.f32.mrb[0].mxu0
    %439 = vmatprep.mubr.bf16.mxu0 0
    %440 = vmatmul.mubr.bf16.gmra.mrb[0].mxu0 %v239
    %v441 = vpop.f32.mrb[0].mxu0
    %v442 = vadd.f32 %v101, %v441
    %v443 = vpop.f32.mrb[0].mxu0
    %v444 = vpop.f32.mrb[0].mxu0
    %v445 = vadd.f32 %v101, %v444
    %v446 = vpop.f32.mrb[0].mxu0
    %447 = vmatprep.mubr.bf16.mxu0 0
    %448 = vmatmul.mubr.bf16.gmra.mrb[0].mxu0 %v240
    %v449 = vpop.f32.mrb[0].mxu0
    %v450 = vadd.f32 %v101, %v449
    %v451 = vpop.f32.mrb[0].mxu0
    %v452 = vpop.f32.mrb[0].mxu0
    %v453 = vadd.f32 %v101, %v452
    %v454 = vpop.f32.mrb[0].mxu0
    %455 = vmatprep.mubr.bf16.mxu0 0
    %456 = vmatmul.mubr.bf16.gmra.mrb[0].mxu0 %v241
    %v457 = vpop.f32.mrb[0].mxu0
    %v458 = vadd.f32 %v101, %v457
    %v459 = vpop.f32.mrb[0].mxu0
    %v460 = vpop.f32.mrb[0].mxu0
    %v461 = vadd.f32 %v101, %v460
    %v462 = vpop.f32.mrb[0].mxu0
    %463 = vmatprep.mubr.bf16.mxu0 0
    %464 = vmatmul.mubr.bf16.gmra.mrb[0].mxu0 %v242
    %v465 = vpop.f32.mrb[0].mxu0
    %v466 = vadd.f32 %v101, %v465
    %v467 = vpop.f32.mrb[0].mxu0
    %v468 = vpop.f32.mrb[0].mxu0
    %v469 = vadd.f32 %v101, %v468
    %v470 = vpop.f32.mrb[0].mxu0
    %471 = vmatprep.mubr.bf16.mxu0 0
    %472 = vmatmul.mubr.bf16.gmra.mrb[0].mxu0 %v243
    %v473 = vpop.f32.mrb[0].mxu0
    %v474 = vadd.f32 %v101, %v473
    %v475 = vpop.f32.mrb[0].mxu0
    %v476 = vpop.f32.mrb[0].mxu0
    %v477 = vadd.f32 %v101, %v476
    %v478 = vpop.f32.mrb[0].mxu0
    %479 = vmatprep.mubr.bf16.mxu0 0
    %480 = vmatmul.mubr.bf16.gmra.mrb[0].mxu0 %v244
    %v481 = vpop.f32.mrb[0].mxu0
    %v482 = vadd.f32 %v101, %v481
    %v483 = vpop.f32.mrb[0].mxu0
    %v484 = vpop.f32.mrb[0].mxu0
    %v485 = vadd.f32 %v101, %v484
    %v486 = vpop.f32.mrb[0].mxu0
    %487 = vmatprep.mubr.bf16.mxu0 0
    %488 = vmatmul.mubr.bf16.gmra.mrb[0].mxu0 %v245
    %v489 = vpop.f32.mrb[0].mxu0
    %v490 = vadd.f32 %v101, %v489
    %v491 = vpop.f32.mrb[0].mxu0
    %v492 = vpop.f32.mrb[0].mxu0
    %v493 = vadd.f32 %v101, %v492
    %v494 = vpop.f32.mrb[0].mxu0
    %495 = vmatprep.mubr.bf16.mxu0 0
    %496 = vmatmul.mubr.bf16.gmra.mrb[0].mxu0 %v246
    %v497 = vpop.f32.mrb[0].mxu0
    %v498 = vadd.f32 %v101, %v497
    %v499 = vpop.f32.mrb[0].mxu0
    %v500 = vpop.f32.mrb[0].mxu0
    %v501 = vadd.f32 %v101, %v500
    %v502 = vpop.f32.mrb[0].mxu0
    %503 = vmatprep.mubr.bf16.mxu0 0
    %504 = vmatmul.mubr.bf16.gmra.mrb[0].mxu0 %v247
    %v505 = vpop.f32.mrb[0].mxu0
    %v506 = vadd.f32 %v101, %v505
    %v507 = vpop.f32.mrb[0].mxu0
    %v508 = vpop.f32.mrb[0].mxu0
    %v509 = vadd.f32 %v101, %v508
    %v510 = vpop.f32.mrb[0].mxu0
    %511 = vmatprep.mubr.bf16.mxu0 0
    %512 = vmatmul.mubr.bf16.gmra.mrb[0].mxu0 %v248
    %v513 = vpop.f32.mrb[0].mxu0
    %v514 = vadd.f32 %v101, %v513
    %v515 = vpop.f32.mrb[0].mxu0
    %v516 = vpop.f32.mrb[0].mxu0
    %v517 = vadd.f32 %v101, %v516
    %v518 = vpop.f32.mrb[0].mxu0
    %519 = vmatprep.mubr.bf16.mxu0 0
    %520 = vmatmul.mubr.bf16.gmra.mrb[0].mxu0 %v249
    %v521 = vpop.f32.mrb[0].mxu0
    %v522 = vadd.f32 %v101, %v521
    %v523 = vpop.f32.mrb[0].mxu0
    %v524 = vpop.f32.mrb[0].mxu0
    %v525 = vadd.f32 %v101, %v524
    %v526 = vpop.f32.mrb[0].mxu0
    %527 = vmatprep.mubr.bf16.mxu0 0
    %528 = vmatmul.mubr.bf16.gmra.mrb[0].mxu0 %v250
    %v529 = vpop.f32.mrb[0].mxu0
    %v530 = vadd.f32 %v101, %v529
    %v531 = vpop.f32.mrb[0].mxu0
    %v532 = vpop.f32.mrb[0].mxu0
    %v533 = vadd.f32 %v101, %v532
    %v534 = vpop.f32.mrb[0].mxu0
    %535 = vmatprep.mubr.bf16.mxu0 0
    %536 = vmatmul.mubr.bf16.gmra.mrb[0].mxu0 %v251
    %v537 = vpop.f32.mrb[0].mxu0
    %v538 = vadd.f32 %v101, %v537
    %v539 = vpop.f32.mrb[0].mxu0
    %v540 = vpop.f32.mrb[0].mxu0
    %v541 = vadd.f32 %v101, %v540
    %v542 = vpop.f32.mrb[0].mxu0
    %543 = vmatprep.mubr.bf16.mxu0 0
    %544 = vmatmul.mubr.bf16.gmra.mrb[0].mxu0 %v252
    %v545 = vpop.f32.mrb[0].mxu0
    %v546 = vadd.f32 %v101, %v545
    %v547 = vpop.f32.mrb[0].mxu0
    %v548 = vpop.f32.mrb[0].mxu0
    %v549 = vadd.f32 %v101, %v548
    %v550 = vpop.f32.mrb[0].mxu0
    %551 = vmatprep.mubr.bf16.mxu0 0
    %552 = vmatmul.mubr.bf16.gmra.mrb[0].mxu0 %v253
    %v553 = vpop.f32.mrb[0].mxu0
    %v554 = vadd.f32 %v101, %v553
    %v555 = vpop.f32.mrb[0].mxu0
    %v556 = vpop.f32.mrb[0].mxu0
    %v557 = vadd.f32 %v101, %v556
    %v558 = vpop.f32.mrb[0].mxu0
    %559 = vmatprep.mubr.bf16.mxu0 0
    %560 = vmatmul.mubr.bf16.gmra.mrb[0].mxu0 %v254
    %v561 = vpop.f32.mrb[0].mxu0
    %v562 = vadd.f32 %v101, %v561
    %v563 = vpop.f32.mrb[0].mxu0
    %v564 = vpop.f32.mrb[0].mxu0
    %v565 = vadd.f32 %v101, %v564
    %v566 = vpop.f32.mrb[0].mxu0
    %567 = vmatprep.mubr.bf16.mxu0 0
    %568 = vmatmul.mubr.bf16.gmra.mrb[0].mxu0 %v255
    %v569 = vpop.f32.mrb[0].mxu0
    %v570 = vadd.f32 %v101, %v569
    %v571 = vpop.f32.mrb[0].mxu0
    %v572 = vpop.f32.mrb[0].mxu0
    %v573 = vadd.f32 %v101, %v572
    %v574 = vpop.f32.mrb[0].mxu0
    %575 = vmatprep.mubr.bf16.mxu0 0
    %576 = vmatmul.mubr.bf16.gmra.mrb[0].mxu0 %v256
    %v577 = vpop.f32.mrb[0].mxu0
    %v578 = vadd.f32 %v101, %v577
    %v579 = vpop.f32.mrb[0].mxu0
    %v580 = vpop.f32.mrb[0].mxu0
    %v581 = vadd.f32 %v101, %v580
    %v582 = vpop.f32.mrb[0].mxu0
    %583 = vmatprep.mubr.bf16.mxu0 0
    %584 = vmatmul.mubr.bf16.gmra.mrb[0].mxu0 %v257
    %v585 = vpop.f32.mrb[0].mxu0
    %v586 = vadd.f32 %v101, %v585
    %v587 = vpop.f32.mrb[0].mxu0
    %v588 = vpop.f32.mrb[0].mxu0
    %v589 = vadd.f32 %v101, %v588
    %v590 = vpop.f32.mrb[0].mxu0
    %591 = vmatprep.mubr.bf16.mxu0 0
    %592 = vmatmul.mubr.bf16.gmra.mrb[0].mxu0 %v258
    %v593 = vpop.f32.mrb[0].mxu0
    %v594 = vadd.f32 %v101, %v593
    %v595 = vpop.f32.mrb[0].mxu0
    %v596 = vpop.f32.mrb[0].mxu0
    %v597 = vadd.f32 %v101, %v596
    %v598 = vpop.f32.mrb[0].mxu0
    %599 = vmatprep.mubr.bf16.mxu0 0
    %600 = vmatmul.mubr.bf16.gmra.mrb[0].mxu0 %v259
    %v601 = vpop.f32.mrb[0].mxu0
    %v602 = vadd.f32 %v101, %v601
    %v603 = vpop.f32.mrb[0].mxu0
    %v604 = vpop.f32.mrb[0].mxu0
    %v605 = vadd.f32 %v101, %v604
    %v606 = vpop.f32.mrb[0].mxu0
    %607 = vmatprep.mubr.bf16.mxu0 0
    %608 = vmatmul.mubr.bf16.gmra.mrb[0].mxu0 %v260
    %v609 = vpop.f32.mrb[0].mxu0
    %v610 = vadd.f32 %v101, %v609
    %v611 = vpop.f32.mrb[0].mxu0
    %v612 = vpop.f32.mrb[0].mxu0
    %v613 = vadd.f32 %v101, %v612
    %v614 = vpop.f32.mrb[0].mxu0
    %615 = vmatprep.mubr.bf16.mxu0 0
    %616 = vmatmul.mubr.bf16.gmra.mrb[0].mxu0 %v261
    %v617 = vpop.f32.mrb[0].mxu0
    %v618 = vadd.f32 %v101, %v617
    %v619 = vpop.f32.mrb[0].mxu0
    %v620 = vpop.f32.mrb[0].mxu0
    %v621 = vadd.f32 %v101, %v620
    %v622 = vpop.f32.mrb[0].mxu0
    %623 = vmatprep.mubr.bf16.mxu0 0
    %624 = vmatmul.mubr.bf16.gmra.mrb[0].mxu0 %v262
    %v625 = vpop.f32.mrb[0].mxu0
    %v626 = vadd.f32 %v101, %v625
    %v627 = vpop.f32.mrb[0].mxu0
    %v628 = vpop.f32.mrb[0].mxu0
    %v629 = vadd.f32 %v101, %v628
    %v630 = vpop.f32.mrb[0].mxu0
    %631 = vdwg.mxu0
    %v632 = vmin.f32 %v378, 20.0
    %v633 = vmin.f32 %v381, 20.0
    %v634 = vmin.f32 %v386, 20.0
    %v635 = vmin.f32 %v389, 20.0
    %v636 = vmin.f32 %v394, 20.0
    %v637 = vmin.f32 %v397, 20.0
    %v638 = vmin.f32 %v402, 20.0
    %v639 = vmin.f32 %v405, 20.0
    %v640 = vmin.f32 %v410, 20.0
    %v641 = vmin.f32 %v413, 20.0
    %v642 = vmin.f32 %v418, 20.0
    %v643 = vmin.f32 %v421, 20.0
    %v644 = vmin.f32 %v426, 20.0
    %v645 = vmin.f32 %v429, 20.0
    %v646 = vmin.f32 %v434, 20.0
    %v647 = vmin.f32 %v437, 20.0
    %v648 = vmin.f32 %v442, 20.0
    %v649 = vmin.f32 %v445, 20.0
    %v650 = vmin.f32 %v450, 20.0
    %v651 = vmin.f32 %v453, 20.0
    %v652 = vmin.f32 %v458, 20.0
    %v653 = vmin.f32 %v461, 20.0
    %v654 = vmin.f32 %v466, 20.0
    %v655 = vmin.f32 %v469, 20.0
    %v656 = vmin.f32 %v474, 20.0
    %v657 = vmin.f32 %v477, 20.0
    %v658 = vmin.f32 %v482, 20.0
    %v659 = vmin.f32 %v485, 20.0
    %v660 = vmin.f32 %v490, 20.0
    %v661 = vmin.f32 %v493, 20.0
    %v662 = vmin.f32 %v498, 20.0
    %v663 = vmin.f32 %v501, 20.0
    %v664 = vmin.f32 %v506, 20.0
    %v665 = vmin.f32 %v509, 20.0
    %v666 = vmin.f32 %v514, 20.0
    %v667 = vmin.f32 %v517, 20.0
    %v668 = vmin.f32 %v522, 20.0
    %v669 = vmin.f32 %v525, 20.0
    %v670 = vmin.f32 %v530, 20.0
    %v671 = vmin.f32 %v533, 20.0
    %v672 = vmin.f32 %v538, 20.0
    %v673 = vmin.f32 %v541, 20.0
    %v674 = vmin.f32 %v546, 20.0
    %v675 = vmin.f32 %v549, 20.0
    %v676 = vmin.f32 %v554, 20.0
    %v677 = vmin.f32 %v557, 20.0
    %v678 = vmin.f32 %v562, 20.0
    %v679 = vmin.f32 %v565, 20.0
    %v680 = vmin.f32 %v570, 20.0
    %v681 = vmin.f32 %v573, 20.0
    %v682 = vmin.f32 %v578, 20.0
    %v683 = vmin.f32 %v581, 20.0
    %v684 = vmin.f32 %v586, 20.0
    %v685 = vmin.f32 %v589, 20.0
    %v686 = vmin.f32 %v594, 20.0
    %v687 = vmin.f32 %v597, 20.0
    %v688 = vmin.f32 %v602, 20.0
    %v689 = vmin.f32 %v605, 20.0
    %v690 = vmin.f32 %v610, 20.0
    %v691 = vmin.f32 %v613, 20.0
    %v692 = vmin.f32 %v618, 20.0
    %v693 = vmin.f32 %v621, 20.0
    %v694 = vmin.f32 %v626, 20.0
    %v695 = vmin.f32 %v629, 20.0
    %v696 = vmul.f32 %v632, 1.442695
    %v697 = vpow.pop %v696
    %v698 = vmul.f32 %v633, 1.442695
    %v699 = vpow.pop %v698
    %v700 = vmul.f32 %v634, 1.442695
    %v701 = vpow.pop %v700
    %v702 = vmul.f32 %v635, 1.442695
    %v703 = vpow.pop %v702
    %v704 = vmul.f32 %v636, 1.442695
    %v705 = vpow.pop %v704
    %v706 = vmul.f32 %v637, 1.442695
    %v707 = vpow.pop %v706
    %v708 = vmul.f32 %v638, 1.442695
    %v709 = vpow.pop %v708
    %v710 = vmul.f32 %v639, 1.442695
    %v711 = vpow.pop %v710
    %v712 = vmul.f32 %v640, 1.442695
    %v713 = vpow.pop %v712
    %v714 = vmul.f32 %v641, 1.442695
    %v715 = vpow.pop %v714
    %v716 = vmul.f32 %v642, 1.442695
    %v717 = vpow.pop %v716
    %v718 = vmul.f32 %v643, 1.442695
    %v719 = vpow.pop %v718
    %v720 = vmul.f32 %v644, 1.442695
    %v721 = vpow.pop %v720
    %v722 = vmul.f32 %v645, 1.442695
    %v723 = vpow.pop %v722
    %v724 = vmul.f32 %v646, 1.442695
    %v725 = vpow.pop %v724
    %v726 = vmul.f32 %v647, 1.442695
    %v727 = vpow.pop %v726
    %v728 = vmul.f32 %v648, 1.442695
    %v729 = vpow.pop %v728
    %v730 = vmul.f32 %v649, 1.442695
    %v731 = vpow.pop %v730
    %v732 = vmul.f32 %v650, 1.442695
    %v733 = vpow.pop %v732
    %v734 = vmul.f32 %v651, 1.442695
    %v735 = vpow.pop %v734
    %v736 = vmul.f32 %v652, 1.442695
    %v737 = vpow.pop %v736
    %v738 = vmul.f32 %v653, 1.442695
    %v739 = vpow.pop %v738
    %v740 = vmul.f32 %v654, 1.442695
    %v741 = vpow.pop %v740
    %v742 = vmul.f32 %v655, 1.442695
    %v743 = vpow.pop %v742
    %v744 = vmul.f32 %v656, 1.442695
    %v745 = vpow.pop %v744
    %v746 = vmul.f32 %v657, 1.442695
    %v747 = vpow.pop %v746
    %v748 = vmul.f32 %v658, 1.442695
    %v749 = vpow.pop %v748
    %v750 = vmul.f32 %v659, 1.442695
    %v751 = vpow.pop %v750
    %v752 = vmul.f32 %v660, 1.442695
    %v753 = vpow.pop %v752
    %v754 = vmul.f32 %v661, 1.442695
    %v755 = vpow.pop %v754
    %v756 = vmul.f32 %v662, 1.442695
    %v757 = vpow.pop %v756
    %v758 = vmul.f32 %v663, 1.442695
    %v759 = vpow.pop %v758
    %v760 = vmul.f32 %v664, 1.442695
    %v761 = vpow.pop %v760
    %v762 = vmul.f32 %v665, 1.442695
    %v763 = vpow.pop %v762
    %v764 = vmul.f32 %v666, 1.442695
    %v765 = vpow.pop %v764
    %v766 = vmul.f32 %v667, 1.442695
    %v767 = vpow.pop %v766
    %v768 = vmul.f32 %v668, 1.442695
    %v769 = vpow.pop %v768
    %v770 = vmul.f32 %v669, 1.442695
    %v771 = vpow.pop %v770
    %v772 = vmul.f32 %v670, 1.442695
    %v773 = vpow.pop %v772
    %v774 = vmul.f32 %v671, 1.442695
    %v775 = vpow.pop %v774
    %v776 = vmul.f32 %v672, 1.442695
    %v777 = vpow.pop %v776
    %v778 = vmul.f32 %v673, 1.442695
    %v779 = vpow.pop %v778
    %v780 = vmul.f32 %v674, 1.442695
    %v781 = vpow.pop %v780
    %v782 = vmul.f32 %v675, 1.442695
    %v783 = vpow.pop %v782
    %v784 = vmul.f32 %v676, 1.442695
    %v785 = vpow.pop %v784
    %v786 = vmul.f32 %v677, 1.442695
    %v787 = vpow.pop %v786
    %v788 = vmul.f32 %v678, 1.442695
    %v789 = vpow.pop %v788
    %v790 = vmul.f32 %v679, 1.442695
    %v791 = vpow.pop %v790
    %v792 = vmul.f32 %v680, 1.442695
    %v793 = vpow.pop %v792
    %v794 = vmul.f32 %v681, 1.442695
    %v795 = vpow.pop %v794
    %v796 = vmul.f32 %v682, 1.442695
    %v797 = vpow.pop %v796
    %v798 = vmul.f32 %v683, 1.442695
    %v799 = vpow.pop %v798
    %v800 = vmul.f32 %v684, 1.442695
    %v801 = vpow.pop %v800
    %v802 = vmul.f32 %v685, 1.442695
    %v803 = vpow.pop %v802
    %v804 = vmul.f32 %v686, 1.442695
    %v805 = vpow.pop %v804
    %v806 = vmul.f32 %v687, 1.442695
    %v807 = vpow.pop %v806
    %v808 = vmul.f32 %v688, 1.442695
    %v809 = vpow.pop %v808
    %v810 = vmul.f32 %v689, 1.442695
    %v811 = vpow.pop %v810
    %v812 = vmul.f32 %v690, 1.442695
    %v813 = vpow.pop %v812
    %v814 = vmul.f32 %v691, 1.442695
    %v815 = vpow.pop %v814
    %v816 = vmul.f32 %v692, 1.442695
    %v817 = vpow.pop %v816
    %v818 = vmul.f32 %v693, 1.442695
    %v819 = vpow.pop %v818
    %v820 = vmul.f32 %v694, 1.442695
    %v821 = vpow.pop %v820
    %v822 = vmul.f32 %v695, 1.442695
    %v823 = vpow.pop %v822
    %v824 = vadd.f32 %v697, 2.0
    %v825 = vadd.f32 %v699, 2.0
    %v826 = vadd.f32 %v701, 2.0
    %v827 = vadd.f32 %v703, 2.0
    %v828 = vadd.f32 %v705, 2.0
    %v829 = vadd.f32 %v707, 2.0
    %v830 = vadd.f32 %v709, 2.0
    %v831 = vadd.f32 %v711, 2.0
    %v832 = vadd.f32 %v713, 2.0
    %v833 = vadd.f32 %v715, 2.0
    %v834 = vadd.f32 %v717, 2.0
    %v835 = vadd.f32 %v719, 2.0
    %v836 = vadd.f32 %v721, 2.0
    %v837 = vadd.f32 %v723, 2.0
    %v838 = vadd.f32 %v725, 2.0
    %v839 = vadd.f32 %v727, 2.0
    %v840 = vadd.f32 %v729, 2.0
    %v841 = vadd.f32 %v731, 2.0
    %v842 = vadd.f32 %v733, 2.0
    %v843 = vadd.f32 %v735, 2.0
    %v844 = vadd.f32 %v737, 2.0
    %v845 = vadd.f32 %v739, 2.0
    %v846 = vadd.f32 %v741, 2.0
    %v847 = vadd.f32 %v743, 2.0
    %v848 = vadd.f32 %v745, 2.0
    %v849 = vadd.f32 %v747, 2.0
    %v850 = vadd.f32 %v749, 2.0
    %v851 = vadd.f32 %v751, 2.0
    %v852 = vadd.f32 %v753, 2.0
    %v853 = vadd.f32 %v755, 2.0
    %v854 = vadd.f32 %v757, 2.0
    %v855 = vadd.f32 %v759, 2.0
    %v856 = vadd.f32 %v761, 2.0
    %v857 = vadd.f32 %v763, 2.0
    %v858 = vadd.f32 %v765, 2.0
    %v859 = vadd.f32 %v767, 2.0
    %v860 = vadd.f32 %v769, 2.0
    %v861 = vadd.f32 %v771, 2.0
    %v862 = vadd.f32 %v773, 2.0
    %v863 = vadd.f32 %v775, 2.0
    %v864 = vadd.f32 %v777, 2.0
    %v865 = vadd.f32 %v779, 2.0
    %v866 = vadd.f32 %v781, 2.0
    %v867 = vadd.f32 %v783, 2.0
    %v868 = vadd.f32 %v785, 2.0
    %v869 = vadd.f32 %v787, 2.0
    %v870 = vadd.f32 %v789, 2.0
    %v871 = vadd.f32 %v791, 2.0
    %v872 = vadd.f32 %v793, 2.0
    %v873 = vadd.f32 %v795, 2.0
    %v874 = vadd.f32 %v797, 2.0
    %v875 = vadd.f32 %v799, 2.0
    %v876 = vadd.f32 %v801, 2.0
    %v877 = vadd.f32 %v803, 2.0
    %v878 = vadd.f32 %v805, 2.0
    %v879 = vadd.f32 %v807, 2.0
    %v880 = vadd.f32 %v809, 2.0
    %v881 = vadd.f32 %v811, 2.0
    %v882 = vadd.f32 %v813, 2.0
    %v883 = vadd.f32 %v815, 2.0
    %v884 = vadd.f32 %v817, 2.0
    %v885 = vadd.f32 %v819, 2.0
    %v886 = vadd.f32 %v821, 2.0
    %v887 = vadd.f32 %v823, 2.0
    %v888 = vmul.f32 %v697, %v824
    %v889 = vmul.f32 %v699, %v825
    %v890 = vmul.f32 %v701, %v826
    %v891 = vmul.f32 %v703, %v827
    %v892 = vmul.f32 %v705, %v828
    %v893 = vmul.f32 %v707, %v829
    %v894 = vmul.f32 %v709, %v830
    %v895 = vmul.f32 %v711, %v831
    %v896 = vmul.f32 %v713, %v832
    %v897 = vmul.f32 %v715, %v833
    %v898 = vmul.f32 %v717, %v834
    %v899 = vmul.f32 %v719, %v835
    %v900 = vmul.f32 %v721, %v836
    %v901 = vmul.f32 %v723, %v837
    %v902 = vmul.f32 %v725, %v838
    %v903 = vmul.f32 %v727, %v839
    %v904 = vmul.f32 %v729, %v840
    %v905 = vmul.f32 %v731, %v841
    %v906 = vmul.f32 %v733, %v842
    %v907 = vmul.f32 %v735, %v843
    %v908 = vmul.f32 %v737, %v844
    %v909 = vmul.f32 %v739, %v845
    %v910 = vmul.f32 %v741, %v846
    %v911 = vmul.f32 %v743, %v847
    %v912 = vmul.f32 %v745, %v848
    %v913 = vmul.f32 %v747, %v849
    %v914 = vmul.f32 %v749, %v850
    %v915 = vmul.f32 %v751, %v851
    %v916 = vmul.f32 %v753, %v852
    %v917 = vmul.f32 %v755, %v853
    %v918 = vmul.f32 %v757, %v854
    %v919 = vmul.f32 %v759, %v855
    %v920 = vmul.f32 %v761, %v856
    %v921 = vmul.f32 %v763, %v857
    %v922 = vmul.f32 %v765, %v858
    %v923 = vmul.f32 %v767, %v859
    %v924 = vmul.f32 %v769, %v860
    %v925 = vmul.f32 %v771, %v861
    %v926 = vmul.f32 %v773, %v862
    %v927 = vmul.f32 %v775, %v863
    %v928 = vmul.f32 %v777, %v864
    %v929 = vmul.f32 %v779, %v865
    %v930 = vmul.f32 %v781, %v866
    %v931 = vmul.f32 %v783, %v867
    %v932 = vmul.f32 %v785, %v868
    %v933 = vmul.f32 %v787, %v869
    %v934 = vmul.f32 %v789, %v870
    %v935 = vmul.f32 %v791, %v871
    %v936 = vmul.f32 %v793, %v872
    %v937 = vmul.f32 %v795, %v873
    %v938 = vmul.f32 %v797, %v874
    %v939 = vmul.f32 %v799, %v875
    %v940 = vmul.f32 %v801, %v876
    %v941 = vmul.f32 %v803, %v877
    %v942 = vmul.f32 %v805, %v878
    %v943 = vmul.f32 %v807, %v879
    %v944 = vmul.f32 %v809, %v880
    %v945 = vmul.f32 %v811, %v881
    %v946 = vmul.f32 %v813, %v882
    %v947 = vmul.f32 %v815, %v883
    %v948 = vmul.f32 %v817, %v884
    %v949 = vmul.f32 %v819, %v885
    %v950 = vmul.f32 %v821, %v886
    %v951 = vmul.f32 %v823, %v887
    %v952 = vmul.f32 %v378, %v888
    %v953 = vmul.f32 %v381, %v889
    %v954 = vmul.f32 %v386, %v890
    %v955 = vmul.f32 %v389, %v891
    %v956 = vmul.f32 %v394, %v892
    %v957 = vmul.f32 %v397, %v893
    %v958 = vmul.f32 %v402, %v894
    %v959 = vmul.f32 %v405, %v895
    %v960 = vmul.f32 %v410, %v896
    %v961 = vmul.f32 %v413, %v897
    %v962 = vmul.f32 %v418, %v898
    %v963 = vmul.f32 %v421, %v899
    %v964 = vmul.f32 %v426, %v900
    %v965 = vmul.f32 %v429, %v901
    %v966 = vmul.f32 %v434, %v902
    %v967 = vmul.f32 %v437, %v903
    %v968 = vmul.f32 %v442, %v904
    %v969 = vmul.f32 %v445, %v905
    %v970 = vmul.f32 %v450, %v906
    %v971 = vmul.f32 %v453, %v907
    %v972 = vmul.f32 %v458, %v908
    %v973 = vmul.f32 %v461, %v909
    %v974 = vmul.f32 %v466, %v910
    %v975 = vmul.f32 %v469, %v911
    %v976 = vmul.f32 %v474, %v912
    %v977 = vmul.f32 %v477, %v913
    %v978 = vmul.f32 %v482, %v914
    %v979 = vmul.f32 %v485, %v915
    %v980 = vmul.f32 %v490, %v916
    %v981 = vmul.f32 %v493, %v917
    %v982 = vmul.f32 %v498, %v918
    %v983 = vmul.f32 %v501, %v919
    %v984 = vmul.f32 %v506, %v920
    %v985 = vmul.f32 %v509, %v921
    %v986 = vmul.f32 %v514, %v922
    %v987 = vmul.f32 %v517, %v923
    %v988 = vmul.f32 %v522, %v924
    %v989 = vmul.f32 %v525, %v925
    %v990 = vmul.f32 %v530, %v926
    %v991 = vmul.f32 %v533, %v927
    %v992 = vmul.f32 %v538, %v928
    %v993 = vmul.f32 %v541, %v929
    %v994 = vmul.f32 %v546, %v930
    %v995 = vmul.f32 %v549, %v931
    %v996 = vmul.f32 %v554, %v932
    %v997 = vmul.f32 %v557, %v933
    %v998 = vmul.f32 %v562, %v934
    %v999 = vmul.f32 %v565, %v935
    %v1000 = vmul.f32 %v570, %v936
    %v1001 = vmul.f32 %v573, %v937
    %v1002 = vmul.f32 %v578, %v938
    %v1003 = vmul.f32 %v581, %v939
    %v1004 = vmul.f32 %v586, %v940
    %v1005 = vmul.f32 %v589, %v941
    %v1006 = vmul.f32 %v594, %v942
    %v1007 = vmul.f32 %v597, %v943
    %v1008 = vmul.f32 %v602, %v944
    %v1009 = vmul.f32 %v605, %v945
    %v1010 = vmul.f32 %v610, %v946
    %v1011 = vmul.f32 %v613, %v947
    %v1012 = vmul.f32 %v618, %v948
    %v1013 = vmul.f32 %v621, %v949
    %v1014 = vmul.f32 %v626, %v950
    %v1015 = vmul.f32 %v629, %v951
    %v1016 = vadd.f32 %v888, 2.0
    %v1017 = vadd.f32 %v889, 2.0
    %v1018 = vadd.f32 %v890, 2.0
    %v1019 = vadd.f32 %v891, 2.0
    %v1020 = vadd.f32 %v892, 2.0
    %v1021 = vadd.f32 %v893, 2.0
    %v1022 = vadd.f32 %v894, 2.0
    %v1023 = vadd.f32 %v895, 2.0
    %v1024 = vadd.f32 %v896, 2.0
    %v1025 = vadd.f32 %v897, 2.0
    %v1026 = vadd.f32 %v898, 2.0
    %v1027 = vadd.f32 %v899, 2.0
    %v1028 = vadd.f32 %v900, 2.0
    %v1029 = vadd.f32 %v901, 2.0
    %v1030 = vadd.f32 %v902, 2.0
    %v1031 = vadd.f32 %v903, 2.0
    %v1032 = vadd.f32 %v904, 2.0
    %v1033 = vadd.f32 %v905, 2.0
    %v1034 = vadd.f32 %v906, 2.0
    %v1035 = vadd.f32 %v907, 2.0
    %v1036 = vadd.f32 %v908, 2.0
    %v1037 = vadd.f32 %v909, 2.0
    %v1038 = vadd.f32 %v910, 2.0
    %v1039 = vadd.f32 %v911, 2.0
    %v1040 = vadd.f32 %v912, 2.0
    %v1041 = vadd.f32 %v913, 2.0
    %v1042 = vadd.f32 %v914, 2.0
    %v1043 = vadd.f32 %v915, 2.0
    %v1044 = vadd.f32 %v916, 2.0
    %v1045 = vadd.f32 %v917, 2.0
    %v1046 = vadd.f32 %v918, 2.0
    %v1047 = vadd.f32 %v919, 2.0
    %v1048 = vadd.f32 %v920, 2.0
    %v1049 = vadd.f32 %v921, 2.0
    %v1050 = vadd.f32 %v922, 2.0
    %v1051 = vadd.f32 %v923, 2.0
    %v1052 = vadd.f32 %v924, 2.0
    %v1053 = vadd.f32 %v925, 2.0
    %v1054 = vadd.f32 %v926, 2.0
    %v1055 = vadd.f32 %v927, 2.0
    %v1056 = vadd.f32 %v928, 2.0
    %v1057 = vadd.f32 %v929, 2.0
    %v1058 = vadd.f32 %v930, 2.0
    %v1059 = vadd.f32 %v931, 2.0
    %v1060 = vadd.f32 %v932, 2.0
    %v1061 = vadd.f32 %v933, 2.0
    %v1062 = vadd.f32 %v934, 2.0
    %v1063 = vadd.f32 %v935, 2.0
    %v1064 = vadd.f32 %v936, 2.0
    %v1065 = vadd.f32 %v937, 2.0
    %v1066 = vadd.f32 %v938, 2.0
    %v1067 = vadd.f32 %v939, 2.0
    %v1068 = vadd.f32 %v940, 2.0
    %v1069 = vadd.f32 %v941, 2.0
    %v1070 = vadd.f32 %v942, 2.0
    %v1071 = vadd.f32 %v943, 2.0
    %v1072 = vadd.f32 %v944, 2.0
    %v1073 = vadd.f32 %v945, 2.0
    %v1074 = vadd.f32 %v946, 2.0
    %v1075 = vadd.f32 %v947, 2.0
    %v1076 = vadd.f32 %v948, 2.0
    %v1077 = vadd.f32 %v949, 2.0
    %v1078 = vadd.f32 %v950, 2.0
    %v1079 = vadd.f32 %v951, 2.0
    %v1080 = vrcp.pop %v1016
    %v1081 = vrcp.pop %v1017
    %v1082 = vrcp.pop %v1018
    %v1083 = vrcp.pop %v1019
    %v1084 = vrcp.pop %v1020
    %v1085 = vrcp.pop %v1021
    %v1086 = vrcp.pop %v1022
    %v1087 = vrcp.pop %v1023
    %v1088 = vrcp.pop %v1024
    %v1089 = vrcp.pop %v1025
    %v1090 = vrcp.pop %v1026
    %v1091 = vrcp.pop %v1027
    %v1092 = vrcp.pop %v1028
    %v1093 = vrcp.pop %v1029
    %v1094 = vrcp.pop %v1030
    %v1095 = vrcp.pop %v1031
    %v1096 = vrcp.pop %v1032
    %v1097 = vrcp.pop %v1033
    %v1098 = vrcp.pop %v1034
    %v1099 = vrcp.pop %v1035
    %v1100 = vrcp.pop %v1036
    %v1101 = vrcp.pop %v1037
    %v1102 = vrcp.pop %v1038
    %v1103 = vrcp.pop %v1039
    %v1104 = vrcp.pop %v1040
    %v1105 = vrcp.pop %v1041
    %v1106 = vrcp.pop %v1042
    %v1107 = vrcp.pop %v1043
    %v1108 = vrcp.pop %v1044
    %v1109 = vrcp.pop %v1045
    %v1110 = vrcp.pop %v1046
    %v1111 = vrcp.pop %v1047
    %v1112 = vrcp.pop %v1048
    %v1113 = vrcp.pop %v1049
    %v1114 = vrcp.pop %v1050
    %v1115 = vrcp.pop %v1051
    %v1116 = vrcp.pop %v1052
    %v1117 = vrcp.pop %v1053
    %v1118 = vrcp.pop %v1054
    %v1119 = vrcp.pop %v1055
    %v1120 = vrcp.pop %v1056
    %v1121 = vrcp.pop %v1057
    %v1122 = vrcp.pop %v1058
    %v1123 = vrcp.pop %v1059
    %v1124 = vrcp.pop %v1060
    %v1125 = vrcp.pop %v1061
    %v1126 = vrcp.pop %v1062
    %v1127 = vrcp.pop %v1063
    %v1128 = vrcp.pop %v1064
    %v1129 = vrcp.pop %v1065
    %v1130 = vrcp.pop %v1066
    %v1131 = vrcp.pop %v1067
    %v1132 = vrcp.pop %v1068
    %v1133 = vrcp.pop %v1069
    %v1134 = vrcp.pop %v1070
    %v1135 = vrcp.pop %v1071
    %v1136 = vrcp.pop %v1072
    %v1137 = vrcp.pop %v1073
    %v1138 = vrcp.pop %v1074
    %v1139 = vrcp.pop %v1075
    %v1140 = vrcp.pop %v1076
    %v1141 = vrcp.pop %v1077
    %v1142 = vrcp.pop %v1078
    %v1143 = vrcp.pop %v1079
    %v1144 = vmul.f32 %v952, %v1080
    %v1145 = vmul.f32 %v953, %v1081
    %v1146 = vmul.f32 %v954, %v1082
    %v1147 = vmul.f32 %v955, %v1083
    %v1148 = vmul.f32 %v956, %v1084
    %v1149 = vmul.f32 %v957, %v1085
    %v1150 = vmul.f32 %v958, %v1086
    %v1151 = vmul.f32 %v959, %v1087
    %v1152 = vmul.f32 %v960, %v1088
    %v1153 = vmul.f32 %v961, %v1089
    %v1154 = vmul.f32 %v962, %v1090
    %v1155 = vmul.f32 %v963, %v1091
    %v1156 = vmul.f32 %v964, %v1092
    %v1157 = vmul.f32 %v965, %v1093
    %v1158 = vmul.f32 %v966, %v1094
    %v1159 = vmul.f32 %v967, %v1095
    %v1160 = vmul.f32 %v968, %v1096
    %v1161 = vmul.f32 %v969, %v1097
    %v1162 = vmul.f32 %v970, %v1098
    %v1163 = vmul.f32 %v971, %v1099
    %v1164 = vmul.f32 %v972, %v1100
    %v1165 = vmul.f32 %v973, %v1101
    %v1166 = vmul.f32 %v974, %v1102
    %v1167 = vmul.f32 %v975, %v1103
    %v1168 = vmul.f32 %v976, %v1104
    %v1169 = vmul.f32 %v977, %v1105
    %v1170 = vmul.f32 %v978, %v1106
    %v1171 = vmul.f32 %v979, %v1107
    %v1172 = vmul.f32 %v980, %v1108
    %v1173 = vmul.f32 %v981, %v1109
    %v1174 = vmul.f32 %v982, %v1110
    %v1175 = vmul.f32 %v983, %v1111
    %v1176 = vmul.f32 %v984, %v1112
    %v1177 = vmul.f32 %v985, %v1113
    %v1178 = vmul.f32 %v986, %v1114
    %v1179 = vmul.f32 %v987, %v1115
    %v1180 = vmul.f32 %v988, %v1116
    %v1181 = vmul.f32 %v989, %v1117
    %v1182 = vmul.f32 %v990, %v1118
    %v1183 = vmul.f32 %v991, %v1119
    %v1184 = vmul.f32 %v992, %v1120
    %v1185 = vmul.f32 %v993, %v1121
    %v1186 = vmul.f32 %v994, %v1122
    %v1187 = vmul.f32 %v995, %v1123
    %v1188 = vmul.f32 %v996, %v1124
    %v1189 = vmul.f32 %v997, %v1125
    %v1190 = vmul.f32 %v998, %v1126
    %v1191 = vmul.f32 %v999, %v1127
    %v1192 = vmul.f32 %v1000, %v1128
    %v1193 = vmul.f32 %v1001, %v1129
    %v1194 = vmul.f32 %v1002, %v1130
    %v1195 = vmul.f32 %v1003, %v1131
    %v1196 = vmul.f32 %v1004, %v1132
    %v1197 = vmul.f32 %v1005, %v1133
    %v1198 = vmul.f32 %v1006, %v1134
    %v1199 = vmul.f32 %v1007, %v1135
    %v1200 = vmul.f32 %v1008, %v1136
    %v1201 = vmul.f32 %v1009, %v1137
    %v1202 = vmul.f32 %v1010, %v1138
    %v1203 = vmul.f32 %v1011, %v1139
    %v1204 = vmul.f32 %v1012, %v1140
    %v1205 = vmul.f32 %v1013, %v1141
    %v1206 = vmul.f32 %v1014, %v1142
    %v1207 = vmul.f32 %v1015, %v1143
    %vm1208 = vcmp.gt.f32.partialorder %v378, 20.0
    %vm1209 = vcmp.gt.f32.partialorder %v381, 20.0
    %vm1210 = vcmp.gt.f32.partialorder %v386, 20.0
    %vm1211 = vcmp.gt.f32.partialorder %v389, 20.0
    %vm1212 = vcmp.gt.f32.partialorder %v394, 20.0
    %vm1213 = vcmp.gt.f32.partialorder %v397, 20.0
    %vm1214 = vcmp.gt.f32.partialorder %v402, 20.0
    %vm1215 = vcmp.gt.f32.partialorder %v405, 20.0
    %vm1216 = vcmp.gt.f32.partialorder %v410, 20.0
    %vm1217 = vcmp.gt.f32.partialorder %v413, 20.0
    %vm1218 = vcmp.gt.f32.partialorder %v418, 20.0
    %vm1219 = vcmp.gt.f32.partialorder %v421, 20.0
    %vm1220 = vcmp.gt.f32.partialorder %v426, 20.0
    %vm1221 = vcmp.gt.f32.partialorder %v429, 20.0
    %vm1222 = vcmp.gt.f32.partialorder %v434, 20.0
    %vm1223 = vcmp.gt.f32.partialorder %v437, 20.0
    %vm1224 = vcmp.gt.f32.partialorder %v442, 20.0
    %vm1225 = vcmp.gt.f32.partialorder %v445, 20.0
    %vm1226 = vcmp.gt.f32.partialorder %v450, 20.0
    %vm1227 = vcmp.gt.f32.partialorder %v453, 20.0
    %vm1228 = vcmp.gt.f32.partialorder %v458, 20.0
    %vm1229 = vcmp.gt.f32.partialorder %v461, 20.0
    %vm1230 = vcmp.gt.f32.partialorder %v466, 20.0
    %vm1231 = vcmp.gt.f32.partialorder %v469, 20.0
    %vm1232 = vcmp.gt.f32.partialorder %v474, 20.0
    %vm1233 = vcmp.gt.f32.partialorder %v477, 20.0
    %vm1234 = vcmp.gt.f32.partialorder %v482, 20.0
    %vm1235 = vcmp.gt.f32.partialorder %v485, 20.0
    %vm1236 = vcmp.gt.f32.partialorder %v490, 20.0
    %vm1237 = vcmp.gt.f32.partialorder %v493, 20.0
    %vm1238 = vcmp.gt.f32.partialorder %v498, 20.0
    %vm1239 = vcmp.gt.f32.partialorder %v501, 20.0
    %vm1240 = vcmp.gt.f32.partialorder %v506, 20.0
    %vm1241 = vcmp.gt.f32.partialorder %v509, 20.0
    %vm1242 = vcmp.gt.f32.partialorder %v514, 20.0
    %vm1243 = vcmp.gt.f32.partialorder %v517, 20.0
    %vm1244 = vcmp.gt.f32.partialorder %v522, 20.0
    %vm1245 = vcmp.gt.f32.partialorder %v525, 20.0
    %vm1246 = vcmp.gt.f32.partialorder %v530, 20.0
    %vm1247 = vcmp.gt.f32.partialorder %v533, 20.0
    %vm1248 = vcmp.gt.f32.partialorder %v538, 20.0
    %vm1249 = vcmp.gt.f32.partialorder %v541, 20.0
    %vm1250 = vcmp.gt.f32.partialorder %v546, 20.0
    %vm1251 = vcmp.gt.f32.partialorder %v549, 20.0
    %vm1252 = vcmp.gt.f32.partialorder %v554, 20.0
    %vm1253 = vcmp.gt.f32.partialorder %v557, 20.0
    %vm1254 = vcmp.gt.f32.partialorder %v562, 20.0
    %vm1255 = vcmp.gt.f32.partialorder %v565, 20.0
    %vm1256 = vcmp.gt.f32.partialorder %v570, 20.0
    %vm1257 = vcmp.gt.f32.partialorder %v573, 20.0
    %vm1258 = vcmp.gt.f32.partialorder %v578, 20.0
    %vm1259 = vcmp.gt.f32.partialorder %v581, 20.0
    %vm1260 = vcmp.gt.f32.partialorder %v586, 20.0
    %vm1261 = vcmp.gt.f32.partialorder %v589, 20.0
    %vm1262 = vcmp.gt.f32.partialorder %v594, 20.0
    %vm1263 = vcmp.gt.f32.partialorder %v597, 20.0
    %vm1264 = vcmp.gt.f32.partialorder %v602, 20.0
    %vm1265 = vcmp.gt.f32.partialorder %v605, 20.0
    %vm1266 = vcmp.gt.f32.partialorder %v610, 20.0
    %vm1267 = vcmp.gt.f32.partialorder %v613, 20.0
    %vm1268 = vcmp.gt.f32.partialorder %v618, 20.0
    %vm1269 = vcmp.gt.f32.partialorder %v621, 20.0
    %vm1270 = vcmp.gt.f32.partialorder %v626, 20.0
    %vm1271 = vcmp.gt.f32.partialorder %v629, 20.0
    %v1272 = vsel %vm1208, %v378, %v1144
    %v1273 = vsel %vm1209, %v381, %v1145
    %v1274 = vsel %vm1210, %v386, %v1146
    %v1275 = vsel %vm1211, %v389, %v1147
    %v1276 = vsel %vm1212, %v394, %v1148
    %v1277 = vsel %vm1213, %v397, %v1149
    %v1278 = vsel %vm1214, %v402, %v1150
    %v1279 = vsel %vm1215, %v405, %v1151
    %v1280 = vsel %vm1216, %v410, %v1152
    %v1281 = vsel %vm1217, %v413, %v1153
    %v1282 = vsel %vm1218, %v418, %v1154
    %v1283 = vsel %vm1219, %v421, %v1155
    %v1284 = vsel %vm1220, %v426, %v1156
    %v1285 = vsel %vm1221, %v429, %v1157
    %v1286 = vsel %vm1222, %v434, %v1158
    %v1287 = vsel %vm1223, %v437, %v1159
    %v1288 = vsel %vm1224, %v442, %v1160
    %v1289 = vsel %vm1225, %v445, %v1161
    %v1290 = vsel %vm1226, %v450, %v1162
    %v1291 = vsel %vm1227, %v453, %v1163
    %v1292 = vsel %vm1228, %v458, %v1164
    %v1293 = vsel %vm1229, %v461, %v1165
    %v1294 = vsel %vm1230, %v466, %v1166
    %v1295 = vsel %vm1231, %v469, %v1167
    %v1296 = vsel %vm1232, %v474, %v1168
    %v1297 = vsel %vm1233, %v477, %v1169
    %v1298 = vsel %vm1234, %v482, %v1170
    %v1299 = vsel %vm1235, %v485, %v1171
    %v1300 = vsel %vm1236, %v490, %v1172
    %v1301 = vsel %vm1237, %v493, %v1173
    %v1302 = vsel %vm1238, %v498, %v1174
    %v1303 = vsel %vm1239, %v501, %v1175
    %v1304 = vsel %vm1240, %v506, %v1176
    %v1305 = vsel %vm1241, %v509, %v1177
    %v1306 = vsel %vm1242, %v514, %v1178
    %v1307 = vsel %vm1243, %v517, %v1179
    %v1308 = vsel %vm1244, %v522, %v1180
    %v1309 = vsel %vm1245, %v525, %v1181
    %v1310 = vsel %vm1246, %v530, %v1182
    %v1311 = vsel %vm1247, %v533, %v1183
    %v1312 = vsel %vm1248, %v538, %v1184
    %v1313 = vsel %vm1249, %v541, %v1185
    %v1314 = vsel %vm1250, %v546, %v1186
    %v1315 = vsel %vm1251, %v549, %v1187
    %v1316 = vsel %vm1252, %v554, %v1188
    %v1317 = vsel %vm1253, %v557, %v1189
    %v1318 = vsel %vm1254, %v562, %v1190
    %v1319 = vsel %vm1255, %v565, %v1191
    %v1320 = vsel %vm1256, %v570, %v1192
    %v1321 = vsel %vm1257, %v573, %v1193
    %v1322 = vsel %vm1258, %v578, %v1194
    %v1323 = vsel %vm1259, %v581, %v1195
    %v1324 = vsel %vm1260, %v586, %v1196
    %v1325 = vsel %vm1261, %v589, %v1197
    %v1326 = vsel %vm1262, %v594, %v1198
    %v1327 = vsel %vm1263, %v597, %v1199
    %v1328 = vsel %vm1264, %v602, %v1200
    %v1329 = vsel %vm1265, %v605, %v1201
    %v1330 = vsel %vm1266, %v610, %v1202
    %v1331 = vsel %vm1267, %v613, %v1203
    %v1332 = vsel %vm1268, %v618, %v1204
    %v1333 = vsel %vm1269, %v621, %v1205
    %v1334 = vsel %vm1270, %v626, %v1206
    %v1335 = vsel %vm1271, %v629, %v1207
    %v1336 = vpack.c.bf16 %v1273, %v1272
    %v1337 = vpack.c.bf16 %v1275, %v1274
    %v1338 = vpack.c.bf16 %v1277, %v1276
    %v1339 = vpack.c.bf16 %v1279, %v1278
    %v1340 = vpack.c.bf16 %v1281, %v1280
    %v1341 = vpack.c.bf16 %v1283, %v1282
    %v1342 = vpack.c.bf16 %v1285, %v1284
    %v1343 = vpack.c.bf16 %v1287, %v1286
    %v1344 = vpack.c.bf16 %v1289, %v1288
    %v1345 = vpack.c.bf16 %v1291, %v1290
    %v1346 = vpack.c.bf16 %v1293, %v1292
    %v1347 = vpack.c.bf16 %v1295, %v1294
    %v1348 = vpack.c.bf16 %v1297, %v1296
    %v1349 = vpack.c.bf16 %v1299, %v1298
    %v1350 = vpack.c.bf16 %v1301, %v1300
    %v1351 = vpack.c.bf16 %v1303, %v1302
    %v1352 = vpack.c.bf16 %v1305, %v1304
    %v1353 = vpack.c.bf16 %v1307, %v1306
    %v1354 = vpack.c.bf16 %v1309, %v1308
    %v1355 = vpack.c.bf16 %v1311, %v1310
    %v1356 = vpack.c.bf16 %v1313, %v1312
    %v1357 = vpack.c.bf16 %v1315, %v1314
    %v1358 = vpack.c.bf16 %v1317, %v1316
    %v1359 = vpack.c.bf16 %v1319, %v1318
    %v1360 = vpack.c.bf16 %v1321, %v1320
    %v1361 = vpack.c.bf16 %v1323, %v1322
    %v1362 = vpack.c.bf16 %v1325, %v1324
    %v1363 = vpack.c.bf16 %v1327, %v1326
    %v1364 = vpack.c.bf16 %v1329, %v1328
    %v1365 = vpack.c.bf16 %v1331, %v1330
    %v1366 = vpack.c.bf16 %v1333, %v1332
    %v1367 = vpack.c.bf16 %v1335, %v1334
    %v1400 = vunpack.c.l.b16 %v1336
    %v1401 = vunpack.c.h.b16 %v1336
    %v1402 = vunpack.c.l.b16 %v1337
    %v1403 = vunpack.c.h.b16 %v1337
    %v1404 = vunpack.c.l.b16 %v1338
    %v1405 = vunpack.c.h.b16 %v1338
    %v1406 = vunpack.c.l.b16 %v1339
    %v1407 = vunpack.c.h.b16 %v1339
    %v1408 = vunpack.c.l.b16 %v1340
    %v1409 = vunpack.c.h.b16 %v1340
    %v1410 = vunpack.c.l.b16 %v1341
    %v1411 = vunpack.c.h.b16 %v1341
    %v1412 = vunpack.c.l.b16 %v1342
    %v1413 = vunpack.c.h.b16 %v1342
    %v1414 = vunpack.c.l.b16 %v1343
    %v1415 = vunpack.c.h.b16 %v1343
    %v1416 = vunpack.c.l.b16 %v1344
    %v1417 = vunpack.c.h.b16 %v1344
    %v1418 = vunpack.c.l.b16 %v1345
    %v1419 = vunpack.c.h.b16 %v1345
    %v1420 = vunpack.c.l.b16 %v1346
    %v1421 = vunpack.c.h.b16 %v1346
    %v1422 = vunpack.c.l.b16 %v1347
    %v1423 = vunpack.c.h.b16 %v1347
    %v1424 = vunpack.c.l.b16 %v1348
    %v1425 = vunpack.c.h.b16 %v1348
    %v1426 = vunpack.c.l.b16 %v1349
    %v1427 = vunpack.c.h.b16 %v1349
    %v1428 = vunpack.c.l.b16 %v1350
    %v1429 = vunpack.c.h.b16 %v1350
    %v1430 = vunpack.c.l.b16 %v1351
    %v1431 = vunpack.c.h.b16 %v1351
    %v1432 = vunpack.c.l.b16 %v1352
    %v1433 = vunpack.c.h.b16 %v1352
    %v1434 = vunpack.c.l.b16 %v1353
    %v1435 = vunpack.c.h.b16 %v1353
    %v1436 = vunpack.c.l.b16 %v1354
    %v1437 = vunpack.c.h.b16 %v1354
    %v1438 = vunpack.c.l.b16 %v1355
    %v1439 = vunpack.c.h.b16 %v1355
    %v1440 = vunpack.c.l.b16 %v1356
    %v1441 = vunpack.c.h.b16 %v1356
    %v1442 = vunpack.c.l.b16 %v1357
    %v1443 = vunpack.c.h.b16 %v1357
    %v1444 = vunpack.c.l.b16 %v1358
    %v1445 = vunpack.c.h.b16 %v1358
    %v1446 = vunpack.c.l.b16 %v1359
    %v1447 = vunpack.c.h.b16 %v1359
    %v1448 = vunpack.c.l.b16 %v1360
    %v1449 = vunpack.c.h.b16 %v1360
    %v1450 = vunpack.c.l.b16 %v1361
    %v1451 = vunpack.c.h.b16 %v1361
    %v1452 = vunpack.c.l.b16 %v1362
    %v1453 = vunpack.c.h.b16 %v1362
    %v1454 = vunpack.c.l.b16 %v1363
    %v1455 = vunpack.c.h.b16 %v1363
    %v1456 = vunpack.c.l.b16 %v1364
    %v1457 = vunpack.c.h.b16 %v1364
    %v1458 = vunpack.c.l.b16 %v1365
    %v1459 = vunpack.c.h.b16 %v1365
    %v1460 = vunpack.c.l.b16 %v1366
    %v1461 = vunpack.c.h.b16 %v1366
    %v1462 = vunpack.c.l.b16 %v1367
    %v1463 = vunpack.c.h.b16 %v1367
    %v1464 = vpack.c.b16 %v1400, %v1400
    %v1465 = vpack.c.b16 %v1401, %v1401
    %v1466 = vpack.c.b16 %v1402, %v1402
    %v1467 = vpack.c.b16 %v1403, %v1403
    %v1468 = vpack.c.b16 %v1404, %v1404
    %v1469 = vpack.c.b16 %v1405, %v1405
    %v1470 = vpack.c.b16 %v1406, %v1406
    %v1471 = vpack.c.b16 %v1407, %v1407
    %v1472 = vpack.c.b16 %v1408, %v1408
    %v1473 = vpack.c.b16 %v1409, %v1409
    %v1474 = vpack.c.b16 %v1410, %v1410
    %v1475 = vpack.c.b16 %v1411, %v1411
    %v1476 = vpack.c.b16 %v1412, %v1412
    %v1477 = vpack.c.b16 %v1413, %v1413
    %v1478 = vpack.c.b16 %v1414, %v1414
    %v1479 = vpack.c.b16 %v1415, %v1415
    %v1480 = vpack.c.b16 %v1416, %v1416
    %v1481 = vpack.c.b16 %v1417, %v1417
    %v1482 = vpack.c.b16 %v1418, %v1418
    %v1483 = vpack.c.b16 %v1419, %v1419
    %v1484 = vpack.c.b16 %v1420, %v1420
    %v1485 = vpack.c.b16 %v1421, %v1421
    %v1486 = vpack.c.b16 %v1422, %v1422
    %v1487 = vpack.c.b16 %v1423, %v1423
    %v1488 = vpack.c.b16 %v1424, %v1424
    %v1489 = vpack.c.b16 %v1425, %v1425
    %v1490 = vpack.c.b16 %v1426, %v1426
    %v1491 = vpack.c.b16 %v1427, %v1427
    %v1492 = vpack.c.b16 %v1428, %v1428
    %v1493 = vpack.c.b16 %v1429, %v1429
    %v1494 = vpack.c.b16 %v1430, %v1430
    %v1495 = vpack.c.b16 %v1431, %v1431
    %v1496 = vpack.c.b16 %v1432, %v1432
    %v1497 = vpack.c.b16 %v1433, %v1433
    %v1498 = vpack.c.b16 %v1434, %v1434
    %v1499 = vpack.c.b16 %v1435, %v1435
    %v1500 = vpack.c.b16 %v1436, %v1436
    %v1501 = vpack.c.b16 %v1437, %v1437
    %v1502 = vpack.c.b16 %v1438, %v1438
    %v1503 = vpack.c.b16 %v1439, %v1439
    %v1504 = vpack.c.b16 %v1440, %v1440
    %v1505 = vpack.c.b16 %v1441, %v1441
    %v1506 = vpack.c.b16 %v1442, %v1442
    %v1507 = vpack.c.b16 %v1443, %v1443
    %v1508 = vpack.c.b16 %v1444, %v1444
    %v1509 = vpack.c.b16 %v1445, %v1445
    %v1510 = vpack.c.b16 %v1446, %v1446
    %v1511 = vpack.c.b16 %v1447, %v1447
    %v1512 = vpack.c.b16 %v1448, %v1448
    %v1513 = vpack.c.b16 %v1449, %v1449
    %v1514 = vpack.c.b16 %v1450, %v1450
    %v1515 = vpack.c.b16 %v1451, %v1451
    %v1516 = vpack.c.b16 %v1452, %v1452
    %v1517 = vpack.c.b16 %v1453, %v1453
    %v1518 = vpack.c.b16 %v1454, %v1454
    %v1519 = vpack.c.b16 %v1455, %v1455
    %v1520 = vpack.c.b16 %v1456, %v1456
    %v1521 = vpack.c.b16 %v1457, %v1457
    %v1522 = vpack.c.b16 %v1458, %v1458
    %v1523 = vpack.c.b16 %v1459, %v1459
    %v1524 = vpack.c.b16 %v1460, %v1460
    %v1525 = vpack.c.b16 %v1461, %v1461
    %v1526 = vpack.c.b16 %v1462, %v1462
    %v1527 = vpack.c.b16 %v1463, %v1463
    %1592 = vst [vmem:[#allocation2] sm:$0xf] %v1464
    %1593 = vst [vmem:[#allocation2 + $0x4] sm:$0xf] %v1465
    %1594 = vst [vmem:[#allocation2 + $0x8] sm:$0xf] %v1466
    %1595 = vst [vmem:[#allocation2 + $0xc] sm:$0xf] %v1467
    %1596 = vst [vmem:[#allocation2 + $0x10] sm:$0xf] %v1468
    %1597 = vst [vmem:[#allocation2 + $0x14] sm:$0xf] %v1469
    %1598 = vst [vmem:[#allocation2 + $0x18] sm:$0xf] %v1470
    %1599 = vst [vmem:[#allocation2 + $0x1c] sm:$0xf] %v1471
    %1600 = vst [vmem:[#allocation2 + $0x20] sm:$0xf] %v1472
    %1601 = vst [vmem:[#allocation2 + $0x24] sm:$0xf] %v1473
    %1602 = vst [vmem:[#allocation2 + $0x28] sm:$0xf] %v1474
    %1603 = vst [vmem:[#allocation2 + $0x2c] sm:$0xf] %v1475
    %1604 = vst [vmem:[#allocation2 + $0x30] sm:$0xf] %v1476
    %1605 = vst [vmem:[#allocation2 + $0x34] sm:$0xf] %v1477
    %1606 = vst [vmem:[#allocation2 + $0x38] sm:$0xf] %v1478
    %1607 = vst [vmem:[#allocation2 + $0x3c] sm:$0xf] %v1479
    %1608 = vst [vmem:[#allocation2 + $0x40] sm:$0xf] %v1480
    %1609 = vst [vmem:[#allocation2 + $0x44] sm:$0xf] %v1481
    %1610 = vst [vmem:[#allocation2 + $0x48] sm:$0xf] %v1482
    %1611 = vst [vmem:[#allocation2 + $0x4c] sm:$0xf] %v1483
    %1612 = vst [vmem:[#allocation2 + $0x50] sm:$0xf] %v1484
    %1613 = vst [vmem:[#allocation2 + $0x54] sm:$0xf] %v1485
    %1614 = vst [vmem:[#allocation2 + $0x58] sm:$0xf] %v1486
    %1615 = vst [vmem:[#allocation2 + $0x5c] sm:$0xf] %v1487
    %1616 = vst [vmem:[#allocation2 + $0x60] sm:$0xf] %v1488
    %1617 = vst [vmem:[#allocation2 + $0x64] sm:$0xf] %v1489
    %1618 = vst [vmem:[#allocation2 + $0x68] sm:$0xf] %v1490
    %1619 = vst [vmem:[#allocation2 + $0x6c] sm:$0xf] %v1491
    %1620 = vst [vmem:[#allocation2 + $0x70] sm:$0xf] %v1492
    %1621 = vst [vmem:[#allocation2 + $0x74] sm:$0xf] %v1493
    %1622 = vst [vmem:[#allocation2 + $0x78] sm:$0xf] %v1494
    %1623 = vst [vmem:[#allocation2 + $0x7c] sm:$0xf] %v1495
    %1624 = vst [vmem:[#allocation2 + $0x80] sm:$0xf] %v1496
    %1625 = vst [vmem:[#allocation2 + $0x84] sm:$0xf] %v1497
    %1626 = vst [vmem:[#allocation2 + $0x88] sm:$0xf] %v1498
    %1627 = vst [vmem:[#allocation2 + $0x8c] sm:$0xf] %v1499
    %1628 = vst [vmem:[#allocation2 + $0x90] sm:$0xf] %v1500
    %1629 = vst [vmem:[#allocation2 + $0x94] sm:$0xf] %v1501
    %1630 = vst [vmem:[#allocation2 + $0x98] sm:$0xf] %v1502
    %1631 = vst [vmem:[#allocation2 + $0x9c] sm:$0xf] %v1503
    %1632 = vst [vmem:[#allocation2 + $0xa0] sm:$0xf] %v1504
    %1633 = vst [vmem:[#allocation2 + $0xa4] sm:$0xf] %v1505
    %1634 = vst [vmem:[#allocation2 + $0xa8] sm:$0xf] %v1506
    %1635 = vst [vmem:[#allocation2 + $0xac] sm:$0xf] %v1507
    %1636 = vst [vmem:[#allocation2 + $0xb0] sm:$0xf] %v1508
    %1637 = vst [vmem:[#allocation2 + $0xb4] sm:$0xf] %v1509
    %1638 = vst [vmem:[#allocation2 + $0xb8] sm:$0xf] %v1510
    %1639 = vst [vmem:[#allocation2 + $0xbc] sm:$0xf] %v1511
    %1640 = vst [vmem:[#allocation2 + $0xc0] sm:$0xf] %v1512
    %1641 = vst [vmem:[#allocation2 + $0xc4] sm:$0xf] %v1513
    %1642 = vst [vmem:[#allocation2 + $0xc8] sm:$0xf] %v1514
    %1643 = vst [vmem:[#allocation2 + $0xcc] sm:$0xf] %v1515
    %1644 = vst [vmem:[#allocation2 + $0xd0] sm:$0xf] %v1516
    %1645 = vst [vmem:[#allocation2 + $0xd4] sm:$0xf] %v1517
    %1646 = vst [vmem:[#allocation2 + $0xd8] sm:$0xf] %v1518
    %1647 = vst [vmem:[#allocation2 + $0xdc] sm:$0xf] %v1519
    %1648 = vst [vmem:[#allocation2 + $0xe0] sm:$0xf] %v1520
    %1649 = vst [vmem:[#allocation2 + $0xe4] sm:$0xf] %v1521
    %1650 = vst [vmem:[#allocation2 + $0xe8] sm:$0xf] %v1522
    %1651 = vst [vmem:[#allocation2 + $0xec] sm:$0xf] %v1523
    %1652 = vst [vmem:[#allocation2 + $0xf0] sm:$0xf] %v1524
    %1653 = vst [vmem:[#allocation2 + $0xf4] sm:$0xf] %v1525
    %1654 = vst [vmem:[#allocation2 + $0xf8] sm:$0xf] %v1526
    %1655 = vst [vmem:[#allocation2 + $0xfc] sm:$0xf] %v1527
    // Predicated region
    $region14: #{_lambda_.1} parent=1 // pred_check
      _
    $region15: #{_lambda_.1} parent=1 // pred_check_branch
      %1657 = sbr.rel (0) target = $region17
    $region16: #{_lambda_.1} parent=1 // pred_region
      %s1659 = ssub.s32 4096, 4096
      %1660 = vsyncadd [#allocation3], %s1659
      %s1661 = sshll.u32 [#allocation2], 4
      %s1662 = int_to_ptr.vmem [resolvable:$true] %s1661
      %1667 = dma.vmem_to_hbm [thread:$0]  %s1662, 4096, %s3, [#allocation3], 64, 64, 4
    $region17: #{_lambda_.1} parent=1 // pred_fallthru
      _
    // Predicated region
    $region18: #{_lambda_.1} parent=1 // pred_check
      _
    $region19: #{_lambda_.1} parent=1 // pred_check_branch
      %1669 = sbr.rel (0) target = $region21
    $region20: #{_lambda_.1} parent=1 // pred_region
      %1670 = dma.done [#allocation3], 4096
    $region21: #{_lambda_.1} parent=1 // pred_fallthru
      _
    %1671 = vsyncpa [#allocation3], 1

</llo_original>
